<compile_context>
chip_gen: v7x
topology: tpu7x:2x2x1
jax: 0.10.0
libtpu: 0.0.40
codegen_flags: <defaults>
</compile_context>

<pallas_src>
import functools

import jax
import jax.numpy as jnp
from jax.experimental import pallas as pl
from jax.experimental.pallas import tpu as pltpu

NUM_FILTERED_CLASSES = 10  # stand-in for the undefined constant in the source file
_LANES = 128
_SUBLANES = 8
# Per-pipeline-buffer budget for the streamed px tile (conservative across
# v5e / v6e / v7x default scoped-VMEM limits; x2 of this for double buffering).
_PX_TILE_BYTES = 4 * 1024 * 1024


def _round_up(x, m):
    return ((x + m - 1) // m) * m


def _gap(px_ref, *, C, hw, hw_pad):
    """Global average pool over the flattened (zero-padded) spatial axis.

    px_ref: (tile_n, C*hw_pad) bf16  ->  (tile_n, C) f32.
    128-lane chunks are upcast and summed on the VPU in f32; one XLU lane
    reduce per channel.  Zero padding in [hw, hw_pad) contributes nothing to
    the sum; we divide by the true hw.
    """
    n_chunks = hw_pad // _LANES
    cols = []
    for c in range(C):
        base = c * hw_pad
        acc = px_ref[:, base:base + _LANES].astype(jnp.float32)
        for k in range(1, n_chunks):
            lo = base + k * _LANES
            acc = acc + px_ref[:, lo:lo + _LANES].astype(jnp.float32)
        cols.append(jnp.sum(acc, axis=-1, keepdims=True))            # (tile_n, 1)
    pooled = jnp.concatenate(cols, axis=-1) if C > 1 else cols[0]    # (tile_n, C)
    return pooled * jnp.float32(1.0 / hw)


def _forward_tile(px_ref, wb_ref, bb_ref, wc_ref, bc_ref, *, C, hw, hw_pad):
    """GAP -> Linear(C, 2048) -> ReLU -> Linear(2048, nc_pad); f32 logits."""
    pooled = _gap(px_ref, C=C, hw=hw, hw_pad=hw_pad)                 # (tile_n, C) f32
    feat = jnp.dot(pooled.astype(jnp.bfloat16), wb_ref[...],
                   preferred_element_type=jnp.float32) + bb_ref[...]  # (tile_n, 2048)
    feat = jnp.maximum(feat, 0.0)
    logits = jnp.dot(feat.astype(jnp.bfloat16), wc_ref[...],
                     preferred_element_type=jnp.float32) + bc_ref[...]  # (tile_n, nc_pad)
    return logits


def _kernel_infer(px_ref, wb_ref, bb_ref, wc_ref, bc_ref, logits_ref, *,
                  C, hw, hw_pad):
    # Inference path: no cross-entropy work at all.
    logits_ref[...] = _forward_tile(px_ref, wb_ref, bb_ref, wc_ref, bc_ref,
                                    C=C, hw=hw, hw_pad=hw_pad)


def _kernel_train(px_ref, wb_ref, bb_ref, wc_ref, bc_ref, lbl_ref,
                  logits_ref, nll_ref, *, num_classes, C, hw, hw_pad):
    logits = _forward_tile(px_ref, wb_ref, bb_ref, wc_ref, bc_ref,
                           C=C, hw=hw, hw_pad=hw_pad)
    logits_ref[...] = logits

    # Numerically-stable cross-entropy over the real (unpadded) class lanes.
    lane = jax.lax.broadcasted_iota(jnp.int32, logits.shape, 1)
    masked = jnp.where(lane < num_classes, logits, -jnp.inf)         # pad lanes -> -inf
    m = jnp.max(masked, axis=-1, keepdims=True)                      # (tile_n, 1)
    lse = jnp.log(jnp.sum(jnp.exp(masked - m), axis=-1, keepdims=True)) + m

    lbl = lbl_ref[...]                                               # (tile_n, 1) int32
    valid = jnp.logical_and(lbl >= 0, lbl < num_classes)             # padded rows: label == -1
    picked = jnp.sum(jnp.where(lane == lbl, logits, 0.0),
                     axis=-1, keepdims=True)                         # (tile_n, 1)
    nll_ref[...] = jnp.where(valid, lse - picked, 0.0)               # per-row NLL


def _resident_spec(block_shape):
    """Grid-invariant (weight/bias) block; single-buffered when supported."""
    index_map = lambda i: (0,) * len(block_shape)
    try:
        return pl.BlockSpec(block_shape, index_map, pipeline_mode=pl.Buffered(1))
    except (AttributeError, TypeError):
        return pl.BlockSpec(block_shape, index_map)


def simclr_for_classification(pixel_values, wb, bb, wc, bc, labels=None,
                              num_classes=NUM_FILTERED_CLASSES):
    """Forward pass.  Returns {'logits': ..., 'loss': ...} like the torch module."""
    N, C, H, W = pixel_values.shape
    hw = H * W
    hw_pad = _round_up(hw, _LANES)
    feat_dim = wb.shape[1]                            # 2048 per the module spec
    nc_pad = _round_up(num_classes, _LANES)

    # Batch tiling derived from a VMEM byte budget (bf16 px tile <= ~4 MiB per
    # pipeline buffer), multiple of 8 sublanes, capped at 512 rows.
    row_bytes = C * hw_pad * 2                        # bf16
    tile_n = max(_SUBLANES,
                 (_PX_TILE_BYTES // row_bytes) // _SUBLANES * _SUBLANES)
    tile_n = min(512, tile_n, _round_up(N, _SUBLANES))
    num_tiles = (N + tile_n - 1) // tile_n
    n_pad = num_tiles * tile_n

    # ---- glue (plain JAX): layout + dtype prep ----
    px = pixel_values.reshape(N, C, hw).astype(jnp.bfloat16)
    if hw_pad != hw:
        px = jnp.pad(px, ((0, 0), (0, 0), (0, hw_pad - hw)))
    px = px.reshape(N, C * hw_pad)                    # sublane = batch, lane = C*hw
    if n_pad != N:
        px = jnp.pad(px, ((0, n_pad - N), (0, 0)))

    wb_b = wb.astype(jnp.bfloat16)                                    # (C, 2048)
    bb2 = bb.reshape(1, -1).astype(jnp.float32)                       # (1, 2048)
    wc_b = jnp.pad(wc.astype(jnp.bfloat16),
                   ((0, 0), (0, nc_pad - num_classes)))               # (2048, 128)
    bc2 = jnp.pad(bc.reshape(1, -1).astype(jnp.float32),
                  ((0, 0), (0, nc_pad - num_classes)))                # (1, 128)

    # BlockSpecs: activations stream per batch tile; weights are grid-invariant
    # and single-buffered.
    px_spec = pl.BlockSpec((tile_n, C * hw_pad), lambda i: (i, 0))
    wb_spec = _resident_spec((C, feat_dim))
    bb_spec = _resident_spec((1, feat_dim))
    wc_spec = _resident_spec((feat_dim, nc_pad))
    bc_spec = _resident_spec((1, nc_pad))
    logits_spec = pl.BlockSpec((tile_n, nc_pad), lambda i: (i, 0))
    logits_shape = jax.ShapeDtypeStruct((n_pad, nc_pad), jnp.float32)

    flops = (n_pad * C * hw_pad                        # GAP adds
             + 2 * n_pad * C * feat_dim                # backbone matmul
             + 2 * n_pad * feat_dim * nc_pad)          # classifier matmul
    bytes_px = n_pad * C * hw_pad * 2
    bytes_w = (C * feat_dim + feat_dim * nc_pad) * 2 + (feat_dim + nc_pad) * 4
    bytes_logits = n_pad * nc_pad * 4

    shape_kwargs = dict(C=C, hw=hw, hw_pad=hw_pad)

    if labels is not None:
        lbl = labels.astype(jnp.int32).reshape(N, 1)
        if n_pad != N:                                 # padded rows get an "ignore" label
            lbl = jnp.pad(lbl, ((0, n_pad - N), (0, 0)), constant_values=-1)
        lbl_spec = pl.BlockSpec((tile_n, 1), lambda i: (i, 0))
        nll_spec = pl.BlockSpec((tile_n, 1), lambda i: (i, 0))
        nll_shape = jax.ShapeDtypeStruct((n_pad, 1), jnp.float32)

        ce = pl.CostEstimate(
            flops=int(flops),
            transcendentals=int(n_pad * nc_pad + n_pad),
            bytes_accessed=int(bytes_px + bytes_w + bytes_logits + n_pad * 8))

        logits_p, nll = pl.pallas_call(
            functools.partial(_kernel_train, num_classes=num_classes, **shape_kwargs),
            grid=(num_tiles,),
            in_specs=[px_spec, wb_spec, bb_spec, wc_spec, bc_spec, lbl_spec],
            out_specs=(logits_spec, nll_spec),
            out_shape=(logits_shape, nll_shape),
            compiler_params=pltpu.CompilerParams(
                # per-row NLL output: no cross-tile accumulation -> parallel axis
                dimension_semantics=("parallel",)),
            cost_estimate=ce,
        )(px, wb_b, bb2, wc_b, bc2, lbl)

        logits = logits_p[:N, :num_classes]
        # torch CrossEntropyLoss(reduction='mean'): average over non-ignored targets.
        n_valid = jnp.sum((labels >= 0) & (labels < num_classes)).astype(jnp.float32)
        loss = jnp.sum(nll[:N, 0]) / jnp.maximum(n_valid, 1.0)
        return {"logits": logits, "loss": loss}

    ce = pl.CostEstimate(flops=int(flops), transcendentals=0,
                         bytes_accessed=int(bytes_px + bytes_w + bytes_logits))
    logits_p = pl.pallas_call(
        functools.partial(_kernel_infer, **shape_kwargs),
        grid=(num_tiles,),
        in_specs=[px_spec, wb_spec, bb_spec, wc_spec, bc_spec],
        out_specs=logits_spec,
        out_shape=logits_shape,
        compiler_params=pltpu.CompilerParams(
            dimension_semantics=("parallel",)),
        cost_estimate=ce,
    )(px, wb_b, bb2, wc_b, bc2)
    return {"logits": logits_p[:N, :num_classes]}


if __name__ == "__main__":
    # Small shapes consistent with the module (classifier input must be 2048).
    N, C, H, W = 2, 4, 16, 16
    num_classes = NUM_FILTERED_CLASSES

    key = jax.random.PRNGKey(0)
    k_px, k_wb, k_bb, k_wc, k_bc, k_lbl = jax.random.split(key, 6)

    pixel_values = jax.random.normal(k_px, (N, C, H, W), dtype=jnp.float32)

    # Synthetic backbone projection params: Linear(C -> 2048)
    wb = jax.random.normal(k_wb, (C, 2048), dtype=jnp.float32) * 0.5
    bb = jax.random.normal(k_bb, (2048,), dtype=jnp.float32) * 0.01
    # Classifier params: Linear(2048 -> num_classes)
    wc = jax.random.normal(k_wc, (2048, num_classes), dtype=jnp.float32) * 0.1
    bc = jax.random.normal(k_bc, (num_classes,), dtype=jnp.float32) * 0.01

    labels = jax.random.randint(k_lbl, (N,), 0, num_classes)

    # Training path (logits + loss)
    out = simclr_for_classification(pixel_values, wb, bb, wc, bc, labels,
                                    num_classes=num_classes)
    jax.block_until_ready(out)
    logits = out["logits"]
    loss = out["loss"]
    assert logits.shape == (N, num_classes)
    assert jnp.isfinite(loss)

    # Inference path (no labels -> no loss work, no 'loss' key)
    out_inf = simclr_for_classification(pixel_values, wb, bb, wc, bc, None,
                                        num_classes=num_classes)
    jax.block_until_ready(out_inf)
    assert out_inf["logits"].shape == (N, num_classes)
    assert "loss" not in out_inf

    # Pure-JAX f32 reference of the same synthetic forward (bf16-matmul tolerance).
    pooled_ref = pixel_values.mean(axis=(2, 3))
    feat_ref = jnp.maximum(pooled_ref @ wb + bb, 0.0)
    logits_ref = feat_ref @ wc + bc
    lse = jax.scipy.special.logsumexp(logits_ref, axis=-1)
    loss_ref = jnp.mean(lse - logits_ref[jnp.arange(N), labels])

    assert jnp.allclose(logits, logits_ref, atol=1e-2, rtol=5e-2), \
        float(jnp.max(jnp.abs(logits - logits_ref)))
    assert jnp.allclose(out_inf["logits"], logits_ref, atol=1e-2, rtol=5e-2)
    assert jnp.allclose(loss, loss_ref, atol=1e-2, rtol=5e-2), (float(loss), float(loss_ref))

    print("KERNEL_OK")
</pallas_src>

<mosaic_0001>
module attributes {stable_mosaic.version = 11 : i64} {
  func.func @_kernel_train(%arg0: i32, %arg1: memref<8x1024xbf16, #tpu.memory_space<vmem>>, %arg2: memref<4x2048xbf16, #tpu.memory_space<vmem>>, %arg3: memref<1x2048xf32, #tpu.memory_space<vmem>>, %arg4: memref<2048x128xbf16, #tpu.memory_space<vmem>>, %arg5: memref<1x128xf32, #tpu.memory_space<vmem>>, %arg6: memref<8x1xi32, #tpu.memory_space<vmem>>, %arg7: memref<8x128xf32, #tpu.memory_space<vmem>>, %arg8: memref<8x1xf32, #tpu.memory_space<vmem>>) attributes {dimension_semantics = [#tpu.dimension_semantics<parallel>], iteration_bounds = array<i64: 1>, scalar_prefetch = 0 : i64, scratch_operands = 0 : i64, tpu.core_type = #tpu.core_type<tc>, window_params = [{transform_indices = @transform_0, window_bounds = array<i64: 8, 1024>}, {pipeline_mode = #tpu.pipeline_mode<synchronous>, transform_indices = @transform_1, window_bounds = array<i64: 4, 2048>}, {pipeline_mode = #tpu.pipeline_mode<synchronous>, transform_indices = @transform_2, window_bounds = array<i64: 1, 2048>}, {pipeline_mode = #tpu.pipeline_mode<synchronous>, transform_indices = @transform_3, window_bounds = array<i64: 2048, 128>}, {pipeline_mode = #tpu.pipeline_mode<synchronous>, transform_indices = @transform_4, window_bounds = array<i64: 1, 128>}, {transform_indices = @transform_5, window_bounds = array<i64: 8, 1>}, {transform_indices = @transform_6, window_bounds = array<i64: 8, 128>}, {transform_indices = @transform_7, window_bounds = array<i64: 8, 1>}]} {
    %c0 = arith.constant 0 : index
    %c0_0 = arith.constant 0 : index
    %0 = vector.load %arg1[%c0, %c0_0] : memref<8x1024xbf16, #tpu.memory_space<vmem>>, vector<8x128xbf16>
    %1 = arith.extf %0 : vector<8x128xbf16> to vector<8x128xf32>
    %c0_1 = arith.constant 0 : index
    %c128 = arith.constant 128 : index
    %2 = vector.load %arg1[%c0_1, %c128] : memref<8x1024xbf16, #tpu.memory_space<vmem>>, vector<8x128xbf16>
    %3 = arith.extf %2 : vector<8x128xbf16> to vector<8x128xf32>
    %4 = arith.addf %1, %3 : vector<8x128xf32>
    %cst = arith.constant dense<0.000000e+00> : vector<8xf32>
    %5 = vector.multi_reduction <add>, %4, %cst [1] : vector<8x128xf32> to vector<8xf32>
    %6 = vector.shape_cast %5 : vector<8xf32> to vector<8x1xf32>
    %c0_2 = arith.constant 0 : index
    %c256 = arith.constant 256 : index
    %7 = vector.load %arg1[%c0_2, %c256] : memref<8x1024xbf16, #tpu.memory_space<vmem>>, vector<8x128xbf16>
    %8 = arith.extf %7 : vector<8x128xbf16> to vector<8x128xf32>
    %c0_3 = arith.constant 0 : index
    %c384 = arith.constant 384 : index
    %9 = vector.load %arg1[%c0_3, %c384] : memref<8x1024xbf16, #tpu.memory_space<vmem>>, vector<8x128xbf16>
    %10 = arith.extf %9 : vector<8x128xbf16> to vector<8x128xf32>
    %11 = arith.addf %8, %10 : vector<8x128xf32>
    %cst_4 = arith.constant dense<0.000000e+00> : vector<8xf32>
    %12 = vector.multi_reduction <add>, %11, %cst_4 [1] : vector<8x128xf32> to vector<8xf32>
    %13 = vector.shape_cast %12 : vector<8xf32> to vector<8x1xf32>
    %c0_5 = arith.constant 0 : index
    %c512 = arith.constant 512 : index
    %14 = vector.load %arg1[%c0_5, %c512] : memref<8x1024xbf16, #tpu.memory_space<vmem>>, vector<8x128xbf16>
    %15 = arith.extf %14 : vector<8x128xbf16> to vector<8x128xf32>
    %c0_6 = arith.constant 0 : index
    %c640 = arith.constant 640 : index
    %16 = vector.load %arg1[%c0_6, %c640] : memref<8x1024xbf16, #tpu.memory_space<vmem>>, vector<8x128xbf16>
    %17 = arith.extf %16 : vector<8x128xbf16> to vector<8x128xf32>
    %18 = arith.addf %15, %17 : vector<8x128xf32>
    %cst_7 = arith.constant dense<0.000000e+00> : vector<8xf32>
    %19 = vector.multi_reduction <add>, %18, %cst_7 [1] : vector<8x128xf32> to vector<8xf32>
    %20 = vector.shape_cast %19 : vector<8xf32> to vector<8x1xf32>
    %c0_8 = arith.constant 0 : index
    %c768 = arith.constant 768 : index
    %21 = vector.load %arg1[%c0_8, %c768] : memref<8x1024xbf16, #tpu.memory_space<vmem>>, vector<8x128xbf16>
    %22 = arith.extf %21 : vector<8x128xbf16> to vector<8x128xf32>
    %c0_9 = arith.constant 0 : index
    %c896 = arith.constant 896 : index
    %23 = vector.load %arg1[%c0_9, %c896] : memref<8x1024xbf16, #tpu.memory_space<vmem>>, vector<8x128xbf16>
    %24 = arith.extf %23 : vector<8x128xbf16> to vector<8x128xf32>
    %25 = arith.addf %22, %24 : vector<8x128xf32>
    %cst_10 = arith.constant dense<0.000000e+00> : vector<8xf32>
    %26 = vector.multi_reduction <add>, %25, %cst_10 [1] : vector<8x128xf32> to vector<8xf32>
    %27 = vector.shape_cast %26 : vector<8xf32> to vector<8x1xf32>
    %28 = tpu.concatenate %6, %13, %20, %27 in 1 : vector<8x1xf32>, vector<8x1xf32>, vector<8x1xf32>, vector<8x1xf32> -> vector<8x4xf32>
    %cst_11 = arith.constant 3.906250e-03 : f32
    %29 = vector.broadcast %cst_11 : f32 to vector<8x4xf32>
    %30 = arith.mulf %28, %29 : vector<8x4xf32>
    %31 = arith.truncf %30 : vector<8x4xf32> to vector<8x4xbf16>
    %c0_12 = arith.constant 0 : index
    %c0_13 = arith.constant 0 : index
    %32 = vector.load %arg2[%c0_12, %c0_13] : memref<4x2048xbf16, #tpu.memory_space<vmem>>, vector<4x2048xbf16>
    %cst_14 = arith.constant dense<0.000000e+00> : vector<8x2048xf32>
    %33 = tpu.matmul %31, %32, %cst_14 {dimension_numbers = #tpu.dot_dimension_numbers<[1], [0], [0], [1], [0, 0, 1, 1], [], []>} : vector<8x4xbf16>, vector<4x2048xbf16>, vector<8x2048xf32> -> vector<8x2048xf32>
    %c0_15 = arith.constant 0 : index
    %c0_16 = arith.constant 0 : index
    %34 = vector.load %arg3[%c0_15, %c0_16] : memref<1x2048xf32, #tpu.memory_space<vmem>>, vector<1x2048xf32>
    %35 = vector.broadcast %34 : vector<1x2048xf32> to vector<8x2048xf32>
    %36 = arith.addf %33, %35 : vector<8x2048xf32>
    %cst_17 = arith.constant 0.000000e+00 : f32
    %37 = vector.broadcast %cst_17 : f32 to vector<8x2048xf32>
    %38 = arith.maximumf %36, %37 : vector<8x2048xf32>
    %39 = arith.truncf %38 : vector<8x2048xf32> to vector<8x2048xbf16>
    %c0_18 = arith.constant 0 : index
    %c0_19 = arith.constant 0 : index
    %40 = vector.load %arg4[%c0_18, %c0_19] : memref<2048x128xbf16, #tpu.memory_space<vmem>>, vector<2048x128xbf16>
    %cst_20 = arith.constant dense<0.000000e+00> : vector<8x128xf32>
    %41 = tpu.matmul %39, %40, %cst_20 {dimension_numbers = #tpu.dot_dimension_numbers<[1], [0], [0], [1], [0, 0, 1, 1], [], []>} : vector<8x2048xbf16>, vector<2048x128xbf16>, vector<8x128xf32> -> vector<8x128xf32>
    %c0_21 = arith.constant 0 : index
    %c0_22 = arith.constant 0 : index
    %42 = vector.load %arg5[%c0_21, %c0_22] : memref<1x128xf32, #tpu.memory_space<vmem>>, vector<1x128xf32>
    %43 = vector.broadcast %42 : vector<1x128xf32> to vector<8x128xf32>
    %44 = arith.addf %41, %43 : vector<8x128xf32>
    %c0_23 = arith.constant 0 : index
    %c0_24 = arith.constant 0 : index
    %45 = vector.load %arg7[%c0_23, %c0_24] : memref<8x128xf32, #tpu.memory_space<vmem>>, vector<8x128xf32>
    tpu.vector_store %arg7[%c0_23, %c0_24], %44 {strides = array<i32>} : memref<8x128xf32, #tpu.memory_space<vmem>>, vector<8x128xf32>,
    %46 = tpu.iota {dimensions = array<i32: 1>} : vector<8x128xi32>
    %c10_i32 = arith.constant 10 : i32
    %47 = vector.broadcast %c10_i32 : i32 to vector<8x128xi32>
    %48 = arith.cmpi slt, %46, %47 : vector<8x128xi32>
    %cst_25 = arith.constant 0xFF800000 : f32
    %49 = vector.broadcast %cst_25 : f32 to vector<8x128xf32>
    %50 = arith.select %48, %44, %49 : vector<8x128xi1>, vector<8x128xf32>
    %cst_26 = arith.constant dense<0xFF800000> : vector<8xf32>
    %51 = vector.multi_reduction <maximumf>, %50, %cst_26 [1] : vector<8x128xf32> to vector<8xf32>
    %52 = vector.shape_cast %51 : vector<8xf32> to vector<8x1xf32>
    %53 = vector.broadcast %52 : vector<8x1xf32> to vector<8x128xf32>
    %54 = arith.subf %50, %53 : vector<8x128xf32>
    %55 = math.exp %54 : vector<8x128xf32>
    %cst_27 = arith.constant dense<0.000000e+00> : vector<8xf32>
    %56 = vector.multi_reduction <add>, %55, %cst_27 [1] : vector<8x128xf32> to vector<8xf32>
    %57 = vector.shape_cast %56 : vector<8xf32> to vector<8x1xf32>
    %58 = math.log %57 : vector<8x1xf32>
    %59 = arith.addf %58, %52 : vector<8x1xf32>
    %c0_28 = arith.constant 0 : index
    %c0_29 = arith.constant 0 : index
    %60 = vector.load %arg6[%c0_28, %c0_29] : memref<8x1xi32, #tpu.memory_space<vmem>>, vector<8x1xi32>
    %c0_i32 = arith.constant 0 : i32
    %61 = vector.broadcast %c0_i32 : i32 to vector<8x1xi32>
    %62 = arith.cmpi sge, %60, %61 : vector<8x1xi32>
    %c10_i32_30 = arith.constant 10 : i32
    %63 = vector.broadcast %c10_i32_30 : i32 to vector<8x1xi32>
    %64 = arith.cmpi slt, %60, %63 : vector<8x1xi32>
    %65 = arith.andi %62, %64 : vector<8x1xi1>
    %66 = vector.broadcast %60 : vector<8x1xi32> to vector<8x128xi32>
    %67 = arith.cmpi eq, %46, %66 : vector<8x128xi32>
    %cst_31 = arith.constant 0.000000e+00 : f32
    %68 = vector.broadcast %cst_31 : f32 to vector<8x128xf32>
    %69 = arith.select %67, %44, %68 : vector<8x128xi1>, vector<8x128xf32>
    %cst_32 = arith.constant dense<0.000000e+00> : vector<8xf32>
    %70 = vector.multi_reduction <add>, %69, %cst_32 [1] : vector<8x128xf32> to vector<8xf32>
    %71 = vector.shape_cast %70 : vector<8xf32> to vector<8x1xf32>
    %72 = arith.subf %59, %71 : vector<8x1xf32>
    %cst_33 = arith.constant 0.000000e+00 : f32
    %73 = vector.broadcast %cst_33 : f32 to vector<8x1xf32>
    %74 = arith.select %65, %72, %73 : vector<8x1xi1>, vector<8x1xf32>
    %c0_34 = arith.constant 0 : index
    %c0_35 = arith.constant 0 : index
    %75 = vector.load %arg8[%c0_34, %c0_35] : memref<8x1xf32, #tpu.memory_space<vmem>>, vector<8x1xf32>
    tpu.vector_store %arg8[%c0_34, %c0_35], %74 {strides = array<i32>} : memref<8x1xf32, #tpu.memory_space<vmem>>, vector<8x1xf32>,
    return
  }
  func.func @transform_0(%arg0: i32) -> (i32, i32) {
    %c0_i32 = arith.constant 0 : i32
    %c0_i32_0 = arith.constant 0 : i32
    return %arg0, %c0_i32 : i32, i32
  }
  func.func @transform_1(%arg0: i32) -> (i32, i32) {
    %c0_i32 = arith.constant 0 : i32
    %c0_i32_0 = arith.constant 0 : i32
    %c0_i32_1 = arith.constant 0 : i32
    return %c0_i32, %c0_i32_0 : i32, i32
  }
  func.func @transform_2(%arg0: i32) -> (i32, i32) {
    %c0_i32 = arith.constant 0 : i32
    %c0_i32_0 = arith.constant 0 : i32
    %c0_i32_1 = arith.constant 0 : i32
    return %c0_i32, %c0_i32_0 : i32, i32
  }
  func.func @transform_3(%arg0: i32) -> (i32, i32) {
    %c0_i32 = arith.constant 0 : i32
    %c0_i32_0 = arith.constant 0 : i32
    %c0_i32_1 = arith.constant 0 : i32
    return %c0_i32, %c0_i32_0 : i32, i32
  }
  func.func @transform_4(%arg0: i32) -> (i32, i32) {
    %c0_i32 = arith.constant 0 : i32
    %c0_i32_0 = arith.constant 0 : i32
    %c0_i32_1 = arith.constant 0 : i32
    return %c0_i32, %c0_i32_0 : i32, i32
  }
  func.func @transform_5(%arg0: i32) -> (i32, i32) {
    %c0_i32 = arith.constant 0 : i32
    %c0_i32_0 = arith.constant 0 : i32
    return %arg0, %c0_i32 : i32, i32
  }
  func.func @transform_6(%arg0: i32) -> (i32, i32) {
    %c0_i32 = arith.constant 0 : i32
    %c0_i32_0 = arith.constant 0 : i32
    return %arg0, %c0_i32 : i32, i32
  }
  func.func @transform_7(%arg0: i32) -> (i32, i32) {
    %c0_i32 = arith.constant 0 : i32
    %c0_i32_0 = arith.constant 0 : i32
    return %arg0, %c0_i32 : i32, i32
  }
}

</mosaic_0001>

<llo_original>
// kernel: tpu_custom_call.1
$region0: #{tpu_custom_call.1}
  #allocation0 [shape = 'u32[]', space=smem, size = 0x4, offset = 0x4, fixed_abs, tag = 'smem constant byte address 0x4 - core index']
  #allocation1 [shape = 'u32[144,128]{1,0:T(1,128)}', space=vmem, size = 0x12000, scoped, tag = 'internal scratch']
  %s0 = inlined_call_operand.hbm [shape: bf16[8,1024], index: 0, kind: input, shape index: {}]
  %s1 = inlined_call_operand.hbm [shape: bf16[4,2048], index: 1, kind: input, shape index: {}]
  %s2 = inlined_call_operand.vmem [shape: f32[1,2048], index: 2, kind: input, shape index: {}]
  %s3 = inlined_call_operand.hbm [shape: bf16[2048,128], index: 3, kind: input, shape index: {}]
  %s4 = inlined_call_operand.vmem [shape: f32[1,128], index: 4, kind: input, shape index: {}]
  %s5 = inlined_call_operand.vmem [shape: s32[8,1], index: 5, kind: input, shape index: {}]
  %s6 = inlined_call_operand.hbm [shape: f32[8,128], index: 6, kind: output, shape index: {0}]
  %s7 = inlined_call_operand.vmem [shape: f32[8,1], index: 7, kind: output, shape index: {1}]
  %8 = xla_tuple %s6, %s7
  %s9 = sld [smem:[#allocation0]]
  $region54: #{tpu_custom_call.1} parent=0
    _
  %s11 = ssub.s32 1, %s9
  %s12 = scalar_select 0, %s11, %s9
  $region1: #{tpu_custom_call.1} parent=0
    #allocation2 [shape = 'u8[16384]{0}', space=vmem, size = 0x4000, scoped, tag = 'input window, operand 0, single buffered']
    #allocation3 [shape = 's32[1]{0}', space=sflag, size = 0x4, scoped, tag = 'scoped memory for tpu_custom_call.1']
    #allocation4 [shape = 's32[1]{0}', space=sflag, size = 0x4, scoped, tag = 'scoped memory for tpu_custom_call.1']
    #allocation5 [shape = 'u8[16384]{0}', space=vmem, size = 0x4000, scoped, tag = 'input window, operand 1, single buffered']
    #allocation6 [shape = 's32[1]{0}', space=sflag, size = 0x4, scoped, tag = 'scoped memory for tpu_custom_call.1']
    #allocation7 [shape = 'u8[524288]{0}', space=vmem, size = 0x80000, scoped, tag = 'input window, operand 3, single buffered']
    #allocation8 [shape = 'u8[4096]{0}', space=vmem, size = 0x1000, scoped, tag = 'output window, operand 0, single buffered']
    %13 = vsyncpa [#allocation3], 0
    %14 = vsyncpa [#allocation6], 0
    %15 = vsyncpa [#allocation4], 0
    // Predicated region
    $region2: #{tpu_custom_call.1} parent=1 // pred_check
      _
    $region3: #{tpu_custom_call.1} parent=1 // pred_check_branch
      %17 = sbr.rel (0) target = $region5
    $region4: #{tpu_custom_call.1} parent=1 // pred_region
      %s19 = ssub.s32 512, 512
      %20 = vsyncadd [#allocation3], %s19
      %s22 = sshll.u32 [#allocation2], 4
      %s23 = int_to_ptr.vmem [resolvable:$true] %s22
      %25 = dma.hbm_to_vmem [thread:$0]  %s0, 512, %s23, [#allocation3]
    $region5: #{tpu_custom_call.1} parent=1 // pred_fallthru
      _
    // Predicated region
    $region6: #{tpu_custom_call.1} parent=1 // pred_check
      _
    $region7: #{tpu_custom_call.1} parent=1 // pred_check_branch
      %27 = sbr.rel (0) target = $region9
    $region8: #{tpu_custom_call.1} parent=1 // pred_region
      %s29 = ssub.s32 512, 512
      %30 = vsyncadd [#allocation6], %s29
      %s32 = sshll.u32 [#allocation5], 4
      %s33 = int_to_ptr.vmem [resolvable:$true] %s32
      %35 = dma.hbm_to_vmem [thread:$0]  %s1, 512, %s33, [#allocation6]
    $region9: #{tpu_custom_call.1} parent=1 // pred_fallthru
      _
    // Predicated region
    $region10: #{tpu_custom_call.1} parent=1 // pred_check
      _
    $region11: #{tpu_custom_call.1} parent=1 // pred_check_branch
      %37 = sbr.rel (0) target = $region13
    $region12: #{tpu_custom_call.1} parent=1 // pred_region
      _
    $region13: #{tpu_custom_call.1} parent=1 // pred_fallthru
      _
    // Predicated region
    $region14: #{tpu_custom_call.1} parent=1 // pred_check
      _
    $region15: #{tpu_custom_call.1} parent=1 // pred_check_branch
      %39 = sbr.rel (0) target = $region17
    $region16: #{tpu_custom_call.1} parent=1 // pred_region
      %s41 = ssub.s32 16384, 16384
      %42 = vsyncadd [#allocation6], %s41
      %s43 = sshll.u32 [#allocation7], 4
      %s44 = int_to_ptr.vmem [resolvable:$true] %s43
      %49 = dma.hbm_to_vmem [thread:$0]  %s3, 16384, %s44, [#allocation6], 64, 64, 4
    $region17: #{tpu_custom_call.1} parent=1 // pred_fallthru
      _
    // Predicated region
    $region18: #{tpu_custom_call.1} parent=1 // pred_check
      _
    $region19: #{tpu_custom_call.1} parent=1 // pred_check_branch
      %51 = sbr.rel (0) target = $region21
    $region20: #{tpu_custom_call.1} parent=1 // pred_region
      _
    $region21: #{tpu_custom_call.1} parent=1 // pred_fallthru
      _
    // Predicated region
    $region22: #{tpu_custom_call.1} parent=1 // pred_check
      _
    $region23: #{tpu_custom_call.1} parent=1 // pred_check_branch
      %53 = sbr.rel (0) target = $region25
    $region24: #{tpu_custom_call.1} parent=1 // pred_region
      _
    $region25: #{tpu_custom_call.1} parent=1 // pred_fallthru
      _
    // Predicated region
    $region26: #{tpu_custom_call.1} parent=1 // pred_check
      _
    $region27: #{tpu_custom_call.1} parent=1 // pred_check_branch
      %55 = sbr.rel (0) target = $region29
    $region28: #{tpu_custom_call.1} parent=1 // pred_region
      %56 = dma.done [#allocation3], 512
    $region29: #{tpu_custom_call.1} parent=1 // pred_fallthru
      _
    // Predicated region
    $region30: #{tpu_custom_call.1} parent=1 // pred_check
      _
    $region31: #{tpu_custom_call.1} parent=1 // pred_check_branch
      %58 = sbr.rel (0) target = $region33
    $region32: #{tpu_custom_call.1} parent=1 // pred_region
      %59 = dma.done [#allocation6], 512
    $region33: #{tpu_custom_call.1} parent=1 // pred_fallthru
      _
    // Predicated region
    $region34: #{tpu_custom_call.1} parent=1 // pred_check
      _
    $region35: #{tpu_custom_call.1} parent=1 // pred_check_branch
      %61 = sbr.rel (0) target = $region37
    $region36: #{tpu_custom_call.1} parent=1 // pred_region
      %62 = dma.done [#allocation6], 16384
    $region37: #{tpu_custom_call.1} parent=1 // pred_fallthru
      _
    %v64 = vld [vmem:[#allocation2] sm:$0xf]
    %v65 = vunpack.c.l.bf16 %v64
    %v66 = vld [vmem:[#allocation2 + $0x4] sm:$0xf]
    %v67 = vunpack.c.l.bf16 %v66
    %v68 = vadd.f32 %v65, %v67
    %69 = vadd.xlane.f32.xlu0 %v68
    %v70 = vpop.xlane.xlu0 %69
    %v71 = vld [vmem:[#allocation2 + $0x8] sm:$0xf]
    %v72 = vunpack.c.l.bf16 %v71
    %v73 = vld [vmem:[#allocation2 + $0xc] sm:$0xf]
    %v74 = vunpack.c.l.bf16 %v73
    %v75 = vadd.f32 %v72, %v74
    %76 = vadd.xlane.f32.xlu0 %v75
    %v77 = vpop.xlane.xlu0 %76
    %v78 = vld [vmem:[#allocation2 + $0x10] sm:$0xf]
    %v79 = vunpack.c.l.bf16 %v78
    %v80 = vld [vmem:[#allocation2 + $0x14] sm:$0xf]
    %v81 = vunpack.c.l.bf16 %v80
    %v82 = vadd.f32 %v79, %v81
    %83 = vadd.xlane.f32.xlu0 %v82
    %v84 = vpop.xlane.xlu0 %83
    %v85 = vld [vmem:[#allocation2 + $0x18] sm:$0xf]
    %v86 = vunpack.c.l.bf16 %v85
    %v87 = vld [vmem:[#allocation2 + $0x1c] sm:$0xf]
    %v88 = vunpack.c.l.bf16 %v87
    %v89 = vadd.f32 %v86, %v88
    %90 = vadd.xlane.f32.xlu0 %v89
    %v91 = vpop.xlane.xlu0 %90
    %vm92 = vcmask 7168
    %v93 = vsel %vm92, %v70, %v77
    %vm94 = vcmask 15360
    %v95 = vsel %vm94, %v93, %v84
    %vm96 = vcmask 23552
    %v97 = vsel %vm96, %v95, %v91
    %v98 = vmul.f32 %v97, 0.00390625
    %v99 = vpack.c.bf16 %v98, %v98
    %v100 = vld [vmem:[#allocation5] sm:$0xff]
    %v101 = vld [vmem:[#allocation5 + $0x8] sm:$0xff]
    %v102 = vld [vmem:[#allocation5 + $0x10] sm:$0xff]
    %v103 = vld [vmem:[#allocation5 + $0x18] sm:$0xff]
    %v104 = vld [vmem:[%s2] sm:$0xff]
    %v105 = vld [vmem:[%s2 + $0x8] sm:$0xff]
    %v108 = vlaneseq
    %v109 = vshrl.u32 %v108, 7
    %v110 = vsub.s32 0, %v109
    %v111 = vrot.slane %v104, %v110
    %v112 = vlaneseq
    %v113 = vshrl.u32 %v112, 7
    %v114 = vsub.s32 1, %v113
    %v115 = vrot.slane %v104, %v114
    %v116 = vlaneseq
    %v117 = vshrl.u32 %v116, 7
    %v118 = vsub.s32 2, %v117
    %v119 = vrot.slane %v104, %v118
    %v120 = vlaneseq
    %v121 = vshrl.u32 %v120, 7
    %v122 = vsub.s32 3, %v121
    %v123 = vrot.slane %v104, %v122
    %v124 = vlaneseq
    %v125 = vshrl.u32 %v124, 7
    %v126 = vsub.s32 4, %v125
    %v127 = vrot.slane %v104, %v126
    %v128 = vlaneseq
    %v129 = vshrl.u32 %v128, 7
    %v130 = vsub.s32 5, %v129
    %v131 = vrot.slane %v104, %v130
    %v132 = vlaneseq
    %v133 = vshrl.u32 %v132, 7
    %v134 = vsub.s32 6, %v133
    %v135 = vrot.slane %v104, %v134
    %v136 = vlaneseq
    %v137 = vshrl.u32 %v136, 7
    %v138 = vsub.s32 7, %v137
    %v139 = vrot.slane %v104, %v138
    %v140 = vlaneseq
    %v141 = vshrl.u32 %v140, 7
    %v142 = vsub.s32 0, %v141
    %v143 = vrot.slane %v105, %v142
    %v144 = vlaneseq
    %v145 = vshrl.u32 %v144, 7
    %v146 = vsub.s32 1, %v145
    %v147 = vrot.slane %v105, %v146
    %v148 = vlaneseq
    %v149 = vshrl.u32 %v148, 7
    %v150 = vsub.s32 2, %v149
    %v151 = vrot.slane %v105, %v150
    %v152 = vlaneseq
    %v153 = vshrl.u32 %v152, 7
    %v154 = vsub.s32 3, %v153
    %v155 = vrot.slane %v105, %v154
    %v156 = vlaneseq
    %v157 = vshrl.u32 %v156, 7
    %v158 = vsub.s32 4, %v157
    %v159 = vrot.slane %v105, %v158
    %v160 = vlaneseq
    %v161 = vshrl.u32 %v160, 7
    %v162 = vsub.s32 5, %v161
    %v163 = vrot.slane %v105, %v162
    %v164 = vlaneseq
    %v165 = vshrl.u32 %v164, 7
    %v166 = vsub.s32 6, %v165
    %v167 = vrot.slane %v105, %v166
    %v168 = vlaneseq
    %v169 = vshrl.u32 %v168, 7
    %v170 = vsub.s32 7, %v169
    %v171 = vrot.slane %v105, %v170
    %v192 = vcombine.high %v100, %v100
    %v194 = vunpack.c.l.s4 1983009808
    %v195 = vunpack.c.0.s8 %v194
    %v196 = vlaneseq
    %v197 = vshrl.u32 %v196, 7
    %v198 = vsub.s32 %v195, %v197
    %v199 = vrot.slane %v100, %v198
    %v201 = vunpack.c.l.s4 1983009808
    %v202 = vunpack.c.0.s8 %v201
    %v203 = vlaneseq
    %v204 = vshrl.u32 %v203, 7
    %v205 = vsub.s32 %v202, %v204
    %v206 = vrot.slane %v192, %v205
    %v207 = vcombine.high %v199, %v199
    %v208 = vcombine.high %v206, %v206
    %v209 = vcombine.high %v101, %v101
    %v211 = vunpack.c.l.s4 1983009808
    %v212 = vunpack.c.0.s8 %v211
    %v213 = vlaneseq
    %v214 = vshrl.u32 %v213, 7
    %v215 = vsub.s32 %v212, %v214
    %v216 = vrot.slane %v101, %v215
    %v218 = vunpack.c.l.s4 1983009808
    %v219 = vunpack.c.0.s8 %v218
    %v220 = vlaneseq
    %v221 = vshrl.u32 %v220, 7
    %v222 = vsub.s32 %v219, %v221
    %v223 = vrot.slane %v209, %v222
    %v224 = vcombine.high %v216, %v216
    %v225 = vcombine.high %v223, %v223
    %v226 = vcombine.high %v102, %v102
    %v228 = vunpack.c.l.s4 1983009808
    %v229 = vunpack.c.0.s8 %v228
    %v230 = vlaneseq
    %v231 = vshrl.u32 %v230, 7
    %v232 = vsub.s32 %v229, %v231
    %v233 = vrot.slane %v102, %v232
    %v235 = vunpack.c.l.s4 1983009808
    %v236 = vunpack.c.0.s8 %v235
    %v237 = vlaneseq
    %v238 = vshrl.u32 %v237, 7
    %v239 = vsub.s32 %v236, %v238
    %v240 = vrot.slane %v226, %v239
    %v241 = vcombine.high %v233, %v233
    %v242 = vcombine.high %v240, %v240
    %v243 = vcombine.high %v103, %v103
    %v245 = vunpack.c.l.s4 1983009808
    %v246 = vunpack.c.0.s8 %v245
    %v247 = vlaneseq
    %v248 = vshrl.u32 %v247, 7
    %v249 = vsub.s32 %v246, %v248
    %v250 = vrot.slane %v103, %v249
    %v252 = vunpack.c.l.s4 1983009808
    %v253 = vunpack.c.0.s8 %v252
    %v254 = vlaneseq
    %v255 = vshrl.u32 %v254, 7
    %v256 = vsub.s32 %v253, %v255
    %v257 = vrot.slane %v243, %v256
    %v258 = vcombine.high %v250, %v250
    %v259 = vcombine.high %v257, %v257
    %vm260 = vcmask 31744
    %v262 = vsel %vm260, %v99, 0
    %vm264 = vcmask 1041408
    %v266 = vsel %vm264, %v199, 0
    %v269 = vsel %vm264, %v207, 0
    %v272 = vsel %vm264, %v206, 0
    %v275 = vsel %vm264, %v208, 0
    %v278 = vsel %vm264, %v216, 0
    %v281 = vsel %vm264, %v224, 0
    %v284 = vsel %vm264, %v223, 0
    %v287 = vsel %vm264, %v225, 0
    %v290 = vsel %vm264, %v233, 0
    %v293 = vsel %vm264, %v241, 0
    %v296 = vsel %vm264, %v240, 0
    %v299 = vsel %vm264, %v242, 0
    %v302 = vsel %vm264, %v250, 0
    %v305 = vsel %vm264, %v258, 0
    %v308 = vsel %vm264, %v257, 0
    %v311 = vsel %vm264, %v259, 0
    %313 = vmatprep.subr.bf16.mxu0 %v269
    %314 = vmatpush1.bf16.msra.mxu0 %v266
    %315 = vmatprep.subr.bf16.mxu0 0
    %316 = vmatpush1.bf16.msra.mxu0 0
    %317 = vmatprep.subr.bf16.mxu0 0
    %318 = vmatpush1.bf16.msra.mxu0 0
    %319 = vmatprep.subr.bf16.mxu0 0
    %320 = vmatpush1.bf16.msra.mxu0 0
    %321 = vmatprep.subr.bf16.mxu0 0
    %322 = vmatpush1.bf16.msra.mxu0 0
    %323 = vmatprep.subr.bf16.mxu0 0
    %324 = vmatpush1.bf16.msra.mxu0 0
    %325 = vmatprep.subr.bf16.mxu0 0
    %326 = vmatpush1.bf16.msra.mxu0 0
    %327 = vmatprep.subr.bf16.mxu0 0
    %328 = vmatpush1.bf16.msra.mxu0 0
    %329 = vmatprep.subr.bf16.mxu0 0
    %330 = vmatpush1.bf16.msra.mxu0 0
    %331 = vmatprep.subr.bf16.mxu0 0
    %332 = vmatpush1.bf16.msra.mxu0 0
    %333 = vmatprep.subr.bf16.mxu0 0
    %334 = vmatpush1.bf16.msra.mxu0 0
    %335 = vmatprep.subr.bf16.mxu0 0
    %336 = vmatpush1.bf16.msra.mxu0 0
    %337 = vmatprep.subr.bf16.mxu0 0
    %338 = vmatpush1.bf16.msra.mxu0 0
    %339 = vmatprep.subr.bf16.mxu0 0
    %340 = vmatpush1.bf16.msra.mxu0 0
    %341 = vmatprep.subr.bf16.mxu0 0
    %342 = vmatpush1.bf16.msra.mxu0 0
    %343 = vmatprep.subr.bf16.mxu0 0
    %344 = vmatpush1.bf16.msra.mxu0 0
    %345 = vmatprep.mubr.bf16.mxu0 0
    %346 = vmatmul.mubr.bf16.gmra.mrb[0].mxu0 %v262
    %v347 = vpop.f32.mrb[0].mxu0
    %v348 = vadd.f32 %v111, %v347
    %v349 = vpop.f32.mrb[0].mxu0
    %v350 = vadd.f32 %v115, %v349
    %v351 = vpop.f32.mrb[0].mxu0
    %v352 = vpop.f32.mrb[0].mxu0
    %353 = vdwg.mxu0
    %354 = vmatprep.subr.bf16.mxu0 %v275
    %355 = vmatpush1.bf16.msra.mxu0 %v272
    %356 = vmatprep.subr.bf16.mxu0 0
    %357 = vmatpush1.bf16.msra.mxu0 0
    %358 = vmatprep.subr.bf16.mxu0 0
    %359 = vmatpush1.bf16.msra.mxu0 0
    %360 = vmatprep.subr.bf16.mxu0 0
    %361 = vmatpush1.bf16.msra.mxu0 0
    %362 = vmatprep.subr.bf16.mxu0 0
    %363 = vmatpush1.bf16.msra.mxu0 0
    %364 = vmatprep.subr.bf16.mxu0 0
    %365 = vmatpush1.bf16.msra.mxu0 0
    %366 = vmatprep.subr.bf16.mxu0 0
    %367 = vmatpush1.bf16.msra.mxu0 0
    %368 = vmatprep.subr.bf16.mxu0 0
    %369 = vmatpush1.bf16.msra.mxu0 0
    %370 = vmatprep.subr.bf16.mxu0 0
    %371 = vmatpush1.bf16.msra.mxu0 0
    %372 = vmatprep.subr.bf16.mxu0 0
    %373 = vmatpush1.bf16.msra.mxu0 0
    %374 = vmatprep.subr.bf16.mxu0 0
    %375 = vmatpush1.bf16.msra.mxu0 0
    %376 = vmatprep.subr.bf16.mxu0 0
    %377 = vmatpush1.bf16.msra.mxu0 0
    %378 = vmatprep.subr.bf16.mxu0 0
    %379 = vmatpush1.bf16.msra.mxu0 0
    %380 = vmatprep.subr.bf16.mxu0 0
    %381 = vmatpush1.bf16.msra.mxu0 0
    %382 = vmatprep.subr.bf16.mxu0 0
    %383 = vmatpush1.bf16.msra.mxu0 0
    %384 = vmatprep.subr.bf16.mxu0 0
    %385 = vmatpush1.bf16.msra.mxu0 0
    %386 = vmatprep.mubr.bf16.mxu0 0
    %387 = vmatmul.mubr.bf16.gmra.mrb[0].mxu0 %v262
    %v388 = vpop.f32.mrb[0].mxu0
    %v389 = vadd.f32 %v119, %v388
    %v390 = vpop.f32.mrb[0].mxu0
    %v391 = vadd.f32 %v123, %v390
    %v392 = vpop.f32.mrb[0].mxu0
    %v393 = vpop.f32.mrb[0].mxu0
    %394 = vdwg.mxu0
    %395 = vmatprep.subr.bf16.mxu0 %v281
    %396 = vmatpush1.bf16.msra.mxu0 %v278
    %397 = vmatprep.subr.bf16.mxu0 0
    %398 = vmatpush1.bf16.msra.mxu0 0
    %399 = vmatprep.subr.bf16.mxu0 0
    %400 = vmatpush1.bf16.msra.mxu0 0
    %401 = vmatprep.subr.bf16.mxu0 0
    %402 = vmatpush1.bf16.msra.mxu0 0
    %403 = vmatprep.subr.bf16.mxu0 0
    %404 = vmatpush1.bf16.msra.mxu0 0
    %405 = vmatprep.subr.bf16.mxu0 0
    %406 = vmatpush1.bf16.msra.mxu0 0
    %407 = vmatprep.subr.bf16.mxu0 0
    %408 = vmatpush1.bf16.msra.mxu0 0
    %409 = vmatprep.subr.bf16.mxu0 0
    %410 = vmatpush1.bf16.msra.mxu0 0
    %411 = vmatprep.subr.bf16.mxu0 0
    %412 = vmatpush1.bf16.msra.mxu0 0
    %413 = vmatprep.subr.bf16.mxu0 0
    %414 = vmatpush1.bf16.msra.mxu0 0
    %415 = vmatprep.subr.bf16.mxu0 0
    %416 = vmatpush1.bf16.msra.mxu0 0
    %417 = vmatprep.subr.bf16.mxu0 0
    %418 = vmatpush1.bf16.msra.mxu0 0
    %419 = vmatprep.subr.bf16.mxu0 0
    %420 = vmatpush1.bf16.msra.mxu0 0
    %421 = vmatprep.subr.bf16.mxu0 0
    %422 = vmatpush1.bf16.msra.mxu0 0
    %423 = vmatprep.subr.bf16.mxu0 0
    %424 = vmatpush1.bf16.msra.mxu0 0
    %425 = vmatprep.subr.bf16.mxu0 0
    %426 = vmatpush1.bf16.msra.mxu0 0
    %427 = vmatprep.mubr.bf16.mxu0 0
    %428 = vmatmul.mubr.bf16.gmra.mrb[0].mxu0 %v262
    %v429 = vpop.f32.mrb[0].mxu0
    %v430 = vadd.f32 %v127, %v429
    %v431 = vpop.f32.mrb[0].mxu0
    %v432 = vadd.f32 %v131, %v431
    %v433 = vpop.f32.mrb[0].mxu0
    %v434 = vpop.f32.mrb[0].mxu0
    %435 = vdwg.mxu0
    %436 = vmatprep.subr.bf16.mxu0 %v287
    %437 = vmatpush1.bf16.msra.mxu0 %v284
    %438 = vmatprep.subr.bf16.mxu0 0
    %439 = vmatpush1.bf16.msra.mxu0 0
    %440 = vmatprep.subr.bf16.mxu0 0
    %441 = vmatpush1.bf16.msra.mxu0 0
    %442 = vmatprep.subr.bf16.mxu0 0
    %443 = vmatpush1.bf16.msra.mxu0 0
    %444 = vmatprep.subr.bf16.mxu0 0
    %445 = vmatpush1.bf16.msra.mxu0 0
    %446 = vmatprep.subr.bf16.mxu0 0
    %447 = vmatpush1.bf16.msra.mxu0 0
    %448 = vmatprep.subr.bf16.mxu0 0
    %449 = vmatpush1.bf16.msra.mxu0 0
    %450 = vmatprep.subr.bf16.mxu0 0
    %451 = vmatpush1.bf16.msra.mxu0 0
    %452 = vmatprep.subr.bf16.mxu0 0
    %453 = vmatpush1.bf16.msra.mxu0 0
    %454 = vmatprep.subr.bf16.mxu0 0
    %455 = vmatpush1.bf16.msra.mxu0 0
    %456 = vmatprep.subr.bf16.mxu0 0
    %457 = vmatpush1.bf16.msra.mxu0 0
    %458 = vmatprep.subr.bf16.mxu0 0
    %459 = vmatpush1.bf16.msra.mxu0 0
    %460 = vmatprep.subr.bf16.mxu0 0
    %461 = vmatpush1.bf16.msra.mxu0 0
    %462 = vmatprep.subr.bf16.mxu0 0
    %463 = vmatpush1.bf16.msra.mxu0 0
    %464 = vmatprep.subr.bf16.mxu0 0
    %465 = vmatpush1.bf16.msra.mxu0 0
    %466 = vmatprep.subr.bf16.mxu0 0
    %467 = vmatpush1.bf16.msra.mxu0 0
    %468 = vmatprep.mubr.bf16.mxu0 0
    %469 = vmatmul.mubr.bf16.gmra.mrb[0].mxu0 %v262
    %v470 = vpop.f32.mrb[0].mxu0
    %v471 = vadd.f32 %v135, %v470
    %v472 = vpop.f32.mrb[0].mxu0
    %v473 = vadd.f32 %v139, %v472
    %v474 = vpop.f32.mrb[0].mxu0
    %v475 = vpop.f32.mrb[0].mxu0
    %476 = vdwg.mxu0
    %477 = vmatprep.subr.bf16.mxu0 %v293
    %478 = vmatpush1.bf16.msra.mxu0 %v290
    %479 = vmatprep.subr.bf16.mxu0 0
    %480 = vmatpush1.bf16.msra.mxu0 0
    %481 = vmatprep.subr.bf16.mxu0 0
    %482 = vmatpush1.bf16.msra.mxu0 0
    %483 = vmatprep.subr.bf16.mxu0 0
    %484 = vmatpush1.bf16.msra.mxu0 0
    %485 = vmatprep.subr.bf16.mxu0 0
    %486 = vmatpush1.bf16.msra.mxu0 0
    %487 = vmatprep.subr.bf16.mxu0 0
    %488 = vmatpush1.bf16.msra.mxu0 0
    %489 = vmatprep.subr.bf16.mxu0 0
    %490 = vmatpush1.bf16.msra.mxu0 0
    %491 = vmatprep.subr.bf16.mxu0 0
    %492 = vmatpush1.bf16.msra.mxu0 0
    %493 = vmatprep.subr.bf16.mxu0 0
    %494 = vmatpush1.bf16.msra.mxu0 0
    %495 = vmatprep.subr.bf16.mxu0 0
    %496 = vmatpush1.bf16.msra.mxu0 0
    %497 = vmatprep.subr.bf16.mxu0 0
    %498 = vmatpush1.bf16.msra.mxu0 0
    %499 = vmatprep.subr.bf16.mxu0 0
    %500 = vmatpush1.bf16.msra.mxu0 0
    %501 = vmatprep.subr.bf16.mxu0 0
    %502 = vmatpush1.bf16.msra.mxu0 0
    %503 = vmatprep.subr.bf16.mxu0 0
    %504 = vmatpush1.bf16.msra.mxu0 0
    %505 = vmatprep.subr.bf16.mxu0 0
    %506 = vmatpush1.bf16.msra.mxu0 0
    %507 = vmatprep.subr.bf16.mxu0 0
    %508 = vmatpush1.bf16.msra.mxu0 0
    %509 = vmatprep.mubr.bf16.mxu0 0
    %510 = vmatmul.mubr.bf16.gmra.mrb[0].mxu0 %v262
    %v511 = vpop.f32.mrb[0].mxu0
    %v512 = vadd.f32 %v143, %v511
    %v513 = vpop.f32.mrb[0].mxu0
    %v514 = vadd.f32 %v147, %v513
    %v515 = vpop.f32.mrb[0].mxu0
    %v516 = vpop.f32.mrb[0].mxu0
    %517 = vdwg.mxu0
    %518 = vmatprep.subr.bf16.mxu0 %v299
    %519 = vmatpush1.bf16.msra.mxu0 %v296
    %520 = vmatprep.subr.bf16.mxu0 0
    %521 = vmatpush1.bf16.msra.mxu0 0
    %522 = vmatprep.subr.bf16.mxu0 0
    %523 = vmatpush1.bf16.msra.mxu0 0
    %524 = vmatprep.subr.bf16.mxu0 0
    %525 = vmatpush1.bf16.msra.mxu0 0
    %526 = vmatprep.subr.bf16.mxu0 0
    %527 = vmatpush1.bf16.msra.mxu0 0
    %528 = vmatprep.subr.bf16.mxu0 0
    %529 = vmatpush1.bf16.msra.mxu0 0
    %530 = vmatprep.subr.bf16.mxu0 0
    %531 = vmatpush1.bf16.msra.mxu0 0
    %532 = vmatprep.subr.bf16.mxu0 0
    %533 = vmatpush1.bf16.msra.mxu0 0
    %534 = vmatprep.subr.bf16.mxu0 0
    %535 = vmatpush1.bf16.msra.mxu0 0
    %536 = vmatprep.subr.bf16.mxu0 0
    %537 = vmatpush1.bf16.msra.mxu0 0
    %538 = vmatprep.subr.bf16.mxu0 0
    %539 = vmatpush1.bf16.msra.mxu0 0
    %540 = vmatprep.subr.bf16.mxu0 0
    %541 = vmatpush1.bf16.msra.mxu0 0
    %542 = vmatprep.subr.bf16.mxu0 0
    %543 = vmatpush1.bf16.msra.mxu0 0
    %544 = vmatprep.subr.bf16.mxu0 0
    %545 = vmatpush1.bf16.msra.mxu0 0
    %546 = vmatprep.subr.bf16.mxu0 0
    %547 = vmatpush1.bf16.msra.mxu0 0
    %548 = vmatprep.subr.bf16.mxu0 0
    %549 = vmatpush1.bf16.msra.mxu0 0
    %550 = vmatprep.mubr.bf16.mxu0 0
    %551 = vmatmul.mubr.bf16.gmra.mrb[0].mxu0 %v262
    %v552 = vpop.f32.mrb[0].mxu0
    %v553 = vadd.f32 %v151, %v552
    %v554 = vpop.f32.mrb[0].mxu0
    %v555 = vadd.f32 %v155, %v554
    %v556 = vpop.f32.mrb[0].mxu0
    %v557 = vpop.f32.mrb[0].mxu0
    %558 = vdwg.mxu0
    %559 = vmatprep.subr.bf16.mxu0 %v305
    %560 = vmatpush1.bf16.msra.mxu0 %v302
    %561 = vmatprep.subr.bf16.mxu0 0
    %562 = vmatpush1.bf16.msra.mxu0 0
    %563 = vmatprep.subr.bf16.mxu0 0
    %564 = vmatpush1.bf16.msra.mxu0 0
    %565 = vmatprep.subr.bf16.mxu0 0
    %566 = vmatpush1.bf16.msra.mxu0 0
    %567 = vmatprep.subr.bf16.mxu0 0
    %568 = vmatpush1.bf16.msra.mxu0 0
    %569 = vmatprep.subr.bf16.mxu0 0
    %570 = vmatpush1.bf16.msra.mxu0 0
    %571 = vmatprep.subr.bf16.mxu0 0
    %572 = vmatpush1.bf16.msra.mxu0 0
    %573 = vmatprep.subr.bf16.mxu0 0
    %574 = vmatpush1.bf16.msra.mxu0 0
    %575 = vmatprep.subr.bf16.mxu0 0
    %576 = vmatpush1.bf16.msra.mxu0 0
    %577 = vmatprep.subr.bf16.mxu0 0
    %578 = vmatpush1.bf16.msra.mxu0 0
    %579 = vmatprep.subr.bf16.mxu0 0
    %580 = vmatpush1.bf16.msra.mxu0 0
    %581 = vmatprep.subr.bf16.mxu0 0
    %582 = vmatpush1.bf16.msra.mxu0 0
    %583 = vmatprep.subr.bf16.mxu0 0
    %584 = vmatpush1.bf16.msra.mxu0 0
    %585 = vmatprep.subr.bf16.mxu0 0
    %586 = vmatpush1.bf16.msra.mxu0 0
    %587 = vmatprep.subr.bf16.mxu0 0
    %588 = vmatpush1.bf16.msra.mxu0 0
    %589 = vmatprep.subr.bf16.mxu0 0
    %590 = vmatpush1.bf16.msra.mxu0 0
    %591 = vmatprep.mubr.bf16.mxu0 0
    %592 = vmatmul.mubr.bf16.gmra.mrb[0].mxu0 %v262
    %v593 = vpop.f32.mrb[0].mxu0
    %v594 = vadd.f32 %v159, %v593
    %v595 = vpop.f32.mrb[0].mxu0
    %v596 = vadd.f32 %v163, %v595
    %v597 = vpop.f32.mrb[0].mxu0
    %v598 = vpop.f32.mrb[0].mxu0
    %599 = vdwg.mxu0
    %600 = vmatprep.subr.bf16.mxu0 %v311
    %601 = vmatpush1.bf16.msra.mxu0 %v308
    %602 = vmatprep.subr.bf16.mxu0 0
    %603 = vmatpush1.bf16.msra.mxu0 0
    %604 = vmatprep.subr.bf16.mxu0 0
    %605 = vmatpush1.bf16.msra.mxu0 0
    %606 = vmatprep.subr.bf16.mxu0 0
    %607 = vmatpush1.bf16.msra.mxu0 0
    %608 = vmatprep.subr.bf16.mxu0 0
    %609 = vmatpush1.bf16.msra.mxu0 0
    %610 = vmatprep.subr.bf16.mxu0 0
    %611 = vmatpush1.bf16.msra.mxu0 0
    %612 = vmatprep.subr.bf16.mxu0 0
    %613 = vmatpush1.bf16.msra.mxu0 0
    %614 = vmatprep.subr.bf16.mxu0 0
    %615 = vmatpush1.bf16.msra.mxu0 0
    %616 = vmatprep.subr.bf16.mxu0 0
    %617 = vmatpush1.bf16.msra.mxu0 0
    %618 = vmatprep.subr.bf16.mxu0 0
    %619 = vmatpush1.bf16.msra.mxu0 0
    %620 = vmatprep.subr.bf16.mxu0 0
    %621 = vmatpush1.bf16.msra.mxu0 0
    %622 = vmatprep.subr.bf16.mxu0 0
    %623 = vmatpush1.bf16.msra.mxu0 0
    %624 = vmatprep.subr.bf16.mxu0 0
    %625 = vmatpush1.bf16.msra.mxu0 0
    %626 = vmatprep.subr.bf16.mxu0 0
    %627 = vmatpush1.bf16.msra.mxu0 0
    %628 = vmatprep.subr.bf16.mxu0 0
    %629 = vmatpush1.bf16.msra.mxu0 0
    %630 = vmatprep.subr.bf16.mxu0 0
    %631 = vmatpush1.bf16.msra.mxu0 0
    %632 = vmatprep.mubr.bf16.mxu0 0
    %633 = vmatmul.mubr.bf16.gmra.mrb[0].mxu0 %v262
    %v634 = vpop.f32.mrb[0].mxu0
    %v635 = vadd.f32 %v167, %v634
    %v636 = vpop.f32.mrb[0].mxu0
    %v637 = vadd.f32 %v171, %v636
    %v638 = vpop.f32.mrb[0].mxu0
    %v639 = vpop.f32.mrb[0].mxu0
    %640 = vdwg.mxu0
    %v641 = vmax.f32 %v348, 0.0
    %v642 = vmax.f32 %v350, 0.0
    %v643 = vmax.f32 %v389, 0.0
    %v644 = vmax.f32 %v391, 0.0
    %v645 = vmax.f32 %v430, 0.0
    %v646 = vmax.f32 %v432, 0.0
    %v647 = vmax.f32 %v471, 0.0
    %v648 = vmax.f32 %v473, 0.0
    %v649 = vmax.f32 %v512, 0.0
    %v650 = vmax.f32 %v514, 0.0
    %v651 = vmax.f32 %v553, 0.0
    %v652 = vmax.f32 %v555, 0.0
    %v653 = vmax.f32 %v594, 0.0
    %v654 = vmax.f32 %v596, 0.0
    %v655 = vmax.f32 %v635, 0.0
    %v656 = vmax.f32 %v637, 0.0
    %v657 = vpack.c.bf16 %v641, %v641
    %v658 = vpack.c.bf16 %v642, %v642
    %v659 = vpack.c.bf16 %v643, %v643
    %v660 = vpack.c.bf16 %v644, %v644
    %v661 = vpack.c.bf16 %v645, %v645
    %v662 = vpack.c.bf16 %v646, %v646
    %v663 = vpack.c.bf16 %v647, %v647
    %v664 = vpack.c.bf16 %v648, %v648
    %v665 = vpack.c.bf16 %v649, %v649
    %v666 = vpack.c.bf16 %v650, %v650
    %v667 = vpack.c.bf16 %v651, %v651
    %v668 = vpack.c.bf16 %v652, %v652
    %v669 = vpack.c.bf16 %v653, %v653
    %v670 = vpack.c.bf16 %v654, %v654
    %v671 = vpack.c.bf16 %v655, %v655
    %v672 = vpack.c.bf16 %v656, %v656
    %v673 = vld [vmem:[#allocation7] sm:$0xf]
    %v674 = vld [vmem:[#allocation7 + $0x4] sm:$0xf]
    %v675 = vld [vmem:[#allocation7 + $0x8] sm:$0xf]
    %v676 = vld [vmem:[#allocation7 + $0xc] sm:$0xf]
    %v677 = vld [vmem:[#allocation7 + $0x10] sm:$0xf]
    %v678 = vld [vmem:[#allocation7 + $0x14] sm:$0xf]
    %v679 = vld [vmem:[#allocation7 + $0x18] sm:$0xf]
    %v680 = vld [vmem:[#allocation7 + $0x1c] sm:$0xf]
    %v681 = vld [vmem:[#allocation7 + $0x20] sm:$0xf]
    %v682 = vld [vmem:[#allocation7 + $0x24] sm:$0xf]
    %v683 = vld [vmem:[#allocation7 + $0x28] sm:$0xf]
    %v684 = vld [vmem:[#allocation7 + $0x2c] sm:$0xf]
    %v685 = vld [vmem:[#allocation7 + $0x30] sm:$0xf]
    %v686 = vld [vmem:[#allocation7 + $0x34] sm:$0xf]
    %v687 = vld [vmem:[#allocation7 + $0x38] sm:$0xf]
    %v688 = vld [vmem:[#allocation7 + $0x3c] sm:$0xf]
    %v689 = vld [vmem:[#allocation7 + $0x40] sm:$0xf]
    %v690 = vld [vmem:[#allocation7 + $0x44] sm:$0xf]
    %v691 = vld [vmem:[#allocation7 + $0x48] sm:$0xf]
    %v692 = vld [vmem:[#allocation7 + $0x4c] sm:$0xf]
    %v693 = vld [vmem:[#allocation7 + $0x50] sm:$0xf]
    %v694 = vld [vmem:[#allocation7 + $0x54] sm:$0xf]
    %v695 = vld [vmem:[#allocation7 + $0x58] sm:$0xf]
    %v696 = vld [vmem:[#allocation7 + $0x5c] sm:$0xf]
    %v697 = vld [vmem:[#allocation7 + $0x60] sm:$0xf]
    %v698 = vld [vmem:[#allocation7 + $0x64] sm:$0xf]
    %v699 = vld [vmem:[#allocation7 + $0x68] sm:$0xf]
    %v700 = vld [vmem:[#allocation7 + $0x6c] sm:$0xf]
    %v701 = vld [vmem:[#allocation7 + $0x70] sm:$0xf]
    %v702 = vld [vmem:[#allocation7 + $0x74] sm:$0xf]
    %v703 = vld [vmem:[#allocation7 + $0x78] sm:$0xf]
    %v704 = vld [vmem:[#allocation7 + $0x7c] sm:$0xf]
    %v705 = vld [vmem:[#allocation7 + $0x80] sm:$0xf]
    %v706 = vld [vmem:[#allocation7 + $0x84] sm:$0xf]
    %v707 = vld [vmem:[#allocation7 + $0x88] sm:$0xf]
    %v708 = vld [vmem:[#allocation7 + $0x8c] sm:$0xf]
    %v709 = vld [vmem:[#allocation7 + $0x90] sm:$0xf]
    %v710 = vld [vmem:[#allocation7 + $0x94] sm:$0xf]
    %v711 = vld [vmem:[#allocation7 + $0x98] sm:$0xf]
    %v712 = vld [vmem:[#allocation7 + $0x9c] sm:$0xf]
    %v713 = vld [vmem:[#allocation7 + $0xa0] sm:$0xf]
    %v714 = vld [vmem:[#allocation7 + $0xa4] sm:$0xf]
    %v715 = vld [vmem:[#allocation7 + $0xa8] sm:$0xf]
    %v716 = vld [vmem:[#allocation7 + $0xac] sm:$0xf]
    %v717 = vld [vmem:[#allocation7 + $0xb0] sm:$0xf]
    %v718 = vld [vmem:[#allocation7 + $0xb4] sm:$0xf]
    %v719 = vld [vmem:[#allocation7 + $0xb8] sm:$0xf]
    %v720 = vld [vmem:[#allocation7 + $0xbc] sm:$0xf]
    %v721 = vld [vmem:[#allocation7 + $0xc0] sm:$0xf]
    %v722 = vld [vmem:[#allocation7 + $0xc4] sm:$0xf]
    %v723 = vld [vmem:[#allocation7 + $0xc8] sm:$0xf]
    %v724 = vld [vmem:[#allocation7 + $0xcc] sm:$0xf]
    %v725 = vld [vmem:[#allocation7 + $0xd0] sm:$0xf]
    %v726 = vld [vmem:[#allocation7 + $0xd4] sm:$0xf]
    %v727 = vld [vmem:[#allocation7 + $0xd8] sm:$0xf]
    %v728 = vld [vmem:[#allocation7 + $0xdc] sm:$0xf]
    %v729 = vld [vmem:[#allocation7 + $0xe0] sm:$0xf]
    %v730 = vld [vmem:[#allocation7 + $0xe4] sm:$0xf]
    %v731 = vld [vmem:[#allocation7 + $0xe8] sm:$0xf]
    %v732 = vld [vmem:[#allocation7 + $0xec] sm:$0xf]
    %v733 = vld [vmem:[#allocation7 + $0xf0] sm:$0xf]
    %v734 = vld [vmem:[#allocation7 + $0xf4] sm:$0xf]
    %v735 = vld [vmem:[#allocation7 + $0xf8] sm:$0xf]
    %v736 = vld [vmem:[#allocation7 + $0xfc] sm:$0xf]
    %v737 = vld [vmem:[#allocation7 + $0x100] sm:$0xf]
    %v738 = vld [vmem:[#allocation7 + $0x104] sm:$0xf]
    %v739 = vld [vmem:[#allocation7 + $0x108] sm:$0xf]
    %v740 = vld [vmem:[#allocation7 + $0x10c] sm:$0xf]
    %v741 = vld [vmem:[#allocation7 + $0x110] sm:$0xf]
    %v742 = vld [vmem:[#allocation7 + $0x114] sm:$0xf]
    %v743 = vld [vmem:[#allocation7 + $0x118] sm:$0xf]
    %v744 = vld [vmem:[#allocation7 + $0x11c] sm:$0xf]
    %v745 = vld [vmem:[#allocation7 + $0x120] sm:$0xf]
    %v746 = vld [vmem:[#allocation7 + $0x124] sm:$0xf]
    %v747 = vld [vmem:[#allocation7 + $0x128] sm:$0xf]
    %v748 = vld [vmem:[#allocation7 + $0x12c] sm:$0xf]
    %v749 = vld [vmem:[#allocation7 + $0x130] sm:$0xf]
    %v750 = vld [vmem:[#allocation7 + $0x134] sm:$0xf]
    %v751 = vld [vmem:[#allocation7 + $0x138] sm:$0xf]
    %v752 = vld [vmem:[#allocation7 + $0x13c] sm:$0xf]
    %v753 = vld [vmem:[#allocation7 + $0x140] sm:$0xf]
    %v754 = vld [vmem:[#allocation7 + $0x144] sm:$0xf]
    %v755 = vld [vmem:[#allocation7 + $0x148] sm:$0xf]
    %v756 = vld [vmem:[#allocation7 + $0x14c] sm:$0xf]
    %v757 = vld [vmem:[#allocation7 + $0x150] sm:$0xf]
    %v758 = vld [vmem:[#allocation7 + $0x154] sm:$0xf]
    %v759 = vld [vmem:[#allocation7 + $0x158] sm:$0xf]
    %v760 = vld [vmem:[#allocation7 + $0x15c] sm:$0xf]
    %v761 = vld [vmem:[#allocation7 + $0x160] sm:$0xf]
    %v762 = vld [vmem:[#allocation7 + $0x164] sm:$0xf]
    %v763 = vld [vmem:[#allocation7 + $0x168] sm:$0xf]
    %v764 = vld [vmem:[#allocation7 + $0x16c] sm:$0xf]
    %v765 = vld [vmem:[#allocation7 + $0x170] sm:$0xf]
    %v766 = vld [vmem:[#allocation7 + $0x174] sm:$0xf]
    %v767 = vld [vmem:[#allocation7 + $0x178] sm:$0xf]
    %v768 = vld [vmem:[#allocation7 + $0x17c] sm:$0xf]
    %v769 = vld [vmem:[#allocation7 + $0x180] sm:$0xf]
    %v770 = vld [vmem:[#allocation7 + $0x184] sm:$0xf]
    %v771 = vld [vmem:[#allocation7 + $0x188] sm:$0xf]
    %v772 = vld [vmem:[#allocation7 + $0x18c] sm:$0xf]
    %v773 = vld [vmem:[#allocation7 + $0x190] sm:$0xf]
    %v774 = vld [vmem:[#allocation7 + $0x194] sm:$0xf]
    %v775 = vld [vmem:[#allocation7 + $0x198] sm:$0xf]
    %v776 = vld [vmem:[#allocation7 + $0x19c] sm:$0xf]
    %v777 = vld [vmem:[#allocation7 + $0x1a0] sm:$0xf]
    %v778 = vld [vmem:[#allocation7 + $0x1a4] sm:$0xf]
    %v779 = vld [vmem:[#allocation7 + $0x1a8] sm:$0xf]
    %v780 = vld [vmem:[#allocation7 + $0x1ac] sm:$0xf]
    %v781 = vld [vmem:[#allocation7 + $0x1b0] sm:$0xf]
    %v782 = vld [vmem:[#allocation7 + $0x1b4] sm:$0xf]
    %v783 = vld [vmem:[#allocation7 + $0x1b8] sm:$0xf]
    %v784 = vld [vmem:[#allocation7 + $0x1bc] sm:$0xf]
    %v785 = vld [vmem:[#allocation7 + $0x1c0] sm:$0xf]
    %v786 = vld [vmem:[#allocation7 + $0x1c4] sm:$0xf]
    %v787 = vld [vmem:[#allocation7 + $0x1c8] sm:$0xf]
    %v788 = vld [vmem:[#allocation7 + $0x1cc] sm:$0xf]
    %v789 = vld [vmem:[#allocation7 + $0x1d0] sm:$0xf]
    %v790 = vld [vmem:[#allocation7 + $0x1d4] sm:$0xf]
    %v791 = vld [vmem:[#allocation7 + $0x1d8] sm:$0xf]
    %v792 = vld [vmem:[#allocation7 + $0x1dc] sm:$0xf]
    %v793 = vld [vmem:[#allocation7 + $0x1e0] sm:$0xf]
    %v794 = vld [vmem:[#allocation7 + $0x1e4] sm:$0xf]
    %v795 = vld [vmem:[#allocation7 + $0x1e8] sm:$0xf]
    %v796 = vld [vmem:[#allocation7 + $0x1ec] sm:$0xf]
    %v797 = vld [vmem:[#allocation7 + $0x1f0] sm:$0xf]
    %v798 = vld [vmem:[#allocation7 + $0x1f4] sm:$0xf]
    %v799 = vld [vmem:[#allocation7 + $0x1f8] sm:$0xf]
    %v800 = vld [vmem:[#allocation7 + $0x1fc] sm:$0xf]
    %v801 = vld [vmem:[#allocation7 + $0x200] sm:$0xf]
    %v802 = vld [vmem:[#allocation7 + $0x204] sm:$0xf]
    %v803 = vld [vmem:[#allocation7 + $0x208] sm:$0xf]
    %v804 = vld [vmem:[#allocation7 + $0x20c] sm:$0xf]
    %v805 = vld [vmem:[#allocation7 + $0x210] sm:$0xf]
    %v806 = vld [vmem:[#allocation7 + $0x214] sm:$0xf]
    %v807 = vld [vmem:[#allocation7 + $0x218] sm:$0xf]
    %v808 = vld [vmem:[#allocation7 + $0x21c] sm:$0xf]
    %v809 = vld [vmem:[#allocation7 + $0x220] sm:$0xf]
    %v810 = vld [vmem:[#allocation7 + $0x224] sm:$0xf]
    %v811 = vld [vmem:[#allocation7 + $0x228] sm:$0xf]
    %v812 = vld [vmem:[#allocation7 + $0x22c] sm:$0xf]
    %v813 = vld [vmem:[#allocation7 + $0x230] sm:$0xf]
    %v814 = vld [vmem:[#allocation7 + $0x234] sm:$0xf]
    %v815 = vld [vmem:[#allocation7 + $0x238] sm:$0xf]
    %v816 = vld [vmem:[#allocation7 + $0x23c] sm:$0xf]
    %v817 = vld [vmem:[#allocation7 + $0x240] sm:$0xf]
    %v818 = vld [vmem:[#allocation7 + $0x244] sm:$0xf]
    %v819 = vld [vmem:[#allocation7 + $0x248] sm:$0xf]
    %v820 = vld [vmem:[#allocation7 + $0x24c] sm:$0xf]
    %v821 = vld [vmem:[#allocation7 + $0x250] sm:$0xf]
    %v822 = vld [vmem:[#allocation7 + $0x254] sm:$0xf]
    %v823 = vld [vmem:[#allocation7 + $0x258] sm:$0xf]
    %v824 = vld [vmem:[#allocation7 + $0x25c] sm:$0xf]
    %v825 = vld [vmem:[#allocation7 + $0x260] sm:$0xf]
    %v826 = vld [vmem:[#allocation7 + $0x264] sm:$0xf]
    %v827 = vld [vmem:[#allocation7 + $0x268] sm:$0xf]
    %v828 = vld [vmem:[#allocation7 + $0x26c] sm:$0xf]
    %v829 = vld [vmem:[#allocation7 + $0x270] sm:$0xf]
    %v830 = vld [vmem:[#allocation7 + $0x274] sm:$0xf]
    %v831 = vld [vmem:[#allocation7 + $0x278] sm:$0xf]
    %v832 = vld [vmem:[#allocation7 + $0x27c] sm:$0xf]
    %v833 = vld [vmem:[#allocation7 + $0x280] sm:$0xf]
    %v834 = vld [vmem:[#allocation7 + $0x284] sm:$0xf]
    %v835 = vld [vmem:[#allocation7 + $0x288] sm:$0xf]
    %v836 = vld [vmem:[#allocation7 + $0x28c] sm:$0xf]
    %v837 = vld [vmem:[#allocation7 + $0x290] sm:$0xf]
    %v838 = vld [vmem:[#allocation7 + $0x294] sm:$0xf]
    %v839 = vld [vmem:[#allocation7 + $0x298] sm:$0xf]
    %v840 = vld [vmem:[#allocation7 + $0x29c] sm:$0xf]
    %v841 = vld [vmem:[#allocation7 + $0x2a0] sm:$0xf]
    %v842 = vld [vmem:[#allocation7 + $0x2a4] sm:$0xf]
    %v843 = vld [vmem:[#allocation7 + $0x2a8] sm:$0xf]
    %v844 = vld [vmem:[#allocation7 + $0x2ac] sm:$0xf]
    %v845 = vld [vmem:[#allocation7 + $0x2b0] sm:$0xf]
    %v846 = vld [vmem:[#allocation7 + $0x2b4] sm:$0xf]
    %v847 = vld [vmem:[#allocation7 + $0x2b8] sm:$0xf]
    %v848 = vld [vmem:[#allocation7 + $0x2bc] sm:$0xf]
    %v849 = vld [vmem:[#allocation7 + $0x2c0] sm:$0xf]
    %v850 = vld [vmem:[#allocation7 + $0x2c4] sm:$0xf]
    %v851 = vld [vmem:[#allocation7 + $0x2c8] sm:$0xf]
    %v852 = vld [vmem:[#allocation7 + $0x2cc] sm:$0xf]
    %v853 = vld [vmem:[#allocation7 + $0x2d0] sm:$0xf]
    %v854 = vld [vmem:[#allocation7 + $0x2d4] sm:$0xf]
    %v855 = vld [vmem:[#allocation7 + $0x2d8] sm:$0xf]
    %v856 = vld [vmem:[#allocation7 + $0x2dc] sm:$0xf]
    %v857 = vld [vmem:[#allocation7 + $0x2e0] sm:$0xf]
    %v858 = vld [vmem:[#allocation7 + $0x2e4] sm:$0xf]
    %v859 = vld [vmem:[#allocation7 + $0x2e8] sm:$0xf]
    %v860 = vld [vmem:[#allocation7 + $0x2ec] sm:$0xf]
    %v861 = vld [vmem:[#allocation7 + $0x2f0] sm:$0xf]
    %v862 = vld [vmem:[#allocation7 + $0x2f4] sm:$0xf]
    %v863 = vld [vmem:[#allocation7 + $0x2f8] sm:$0xf]
    %v864 = vld [vmem:[#allocation7 + $0x2fc] sm:$0xf]
    %v865 = vld [vmem:[#allocation7 + $0x300] sm:$0xf]
    %v866 = vld [vmem:[#allocation7 + $0x304] sm:$0xf]
    %v867 = vld [vmem:[#allocation7 + $0x308] sm:$0xf]
    %v868 = vld [vmem:[#allocation7 + $0x30c] sm:$0xf]
    %v869 = vld [vmem:[#allocation7 + $0x310] sm:$0xf]
    %v870 = vld [vmem:[#allocation7 + $0x314] sm:$0xf]
    %v871 = vld [vmem:[#allocation7 + $0x318] sm:$0xf]
    %v872 = vld [vmem:[#allocation7 + $0x31c] sm:$0xf]
    %v873 = vld [vmem:[#allocation7 + $0x320] sm:$0xf]
    %v874 = vld [vmem:[#allocation7 + $0x324] sm:$0xf]
    %v875 = vld [vmem:[#allocation7 + $0x328] sm:$0xf]
    %v876 = vld [vmem:[#allocation7 + $0x32c] sm:$0xf]
    %v877 = vld [vmem:[#allocation7 + $0x330] sm:$0xf]
    %v878 = vld [vmem:[#allocation7 + $0x334] sm:$0xf]
    %v879 = vld [vmem:[#allocation7 + $0x338] sm:$0xf]
    %v880 = vld [vmem:[#allocation7 + $0x33c] sm:$0xf]
    %v881 = vld [vmem:[#allocation7 + $0x340] sm:$0xf]
    %v882 = vld [vmem:[#allocation7 + $0x344] sm:$0xf]
    %v883 = vld [vmem:[#allocation7 + $0x348] sm:$0xf]
    %v884 = vld [vmem:[#allocation7 + $0x34c] sm:$0xf]
    %v885 = vld [vmem:[#allocation7 + $0x350] sm:$0xf]
    %v886 = vld [vmem:[#allocation7 + $0x354] sm:$0xf]
    %v887 = vld [vmem:[#allocation7 + $0x358] sm:$0xf]
    %v888 = vld [vmem:[#allocation7 + $0x35c] sm:$0xf]
    %v889 = vld [vmem:[#allocation7 + $0x360] sm:$0xf]
    %v890 = vld [vmem:[#allocation7 + $0x364] sm:$0xf]
    %v891 = vld [vmem:[#allocation7 + $0x368] sm:$0xf]
    %v892 = vld [vmem:[#allocation7 + $0x36c] sm:$0xf]
    %v893 = vld [vmem:[#allocation7 + $0x370] sm:$0xf]
    %v894 = vld [vmem:[#allocation7 + $0x374] sm:$0xf]
    %v895 = vld [vmem:[#allocation7 + $0x378] sm:$0xf]
    %v896 = vld [vmem:[#allocation7 + $0x37c] sm:$0xf]
    %v897 = vld [vmem:[#allocation7 + $0x380] sm:$0xf]
    %v898 = vld [vmem:[#allocation7 + $0x384] sm:$0xf]
    %v899 = vld [vmem:[#allocation7 + $0x388] sm:$0xf]
    %v900 = vld [vmem:[#allocation7 + $0x38c] sm:$0xf]
    %v901 = vld [vmem:[#allocation7 + $0x390] sm:$0xf]
    %v902 = vld [vmem:[#allocation7 + $0x394] sm:$0xf]
    %v903 = vld [vmem:[#allocation7 + $0x398] sm:$0xf]
    %v904 = vld [vmem:[#allocation7 + $0x39c] sm:$0xf]
    %v905 = vld [vmem:[#allocation7 + $0x3a0] sm:$0xf]
    %v906 = vld [vmem:[#allocation7 + $0x3a4] sm:$0xf]
    %v907 = vld [vmem:[#allocation7 + $0x3a8] sm:$0xf]
    %v908 = vld [vmem:[#allocation7 + $0x3ac] sm:$0xf]
    %v909 = vld [vmem:[#allocation7 + $0x3b0] sm:$0xf]
    %v910 = vld [vmem:[#allocation7 + $0x3b4] sm:$0xf]
    %v911 = vld [vmem:[#allocation7 + $0x3b8] sm:$0xf]
    %v912 = vld [vmem:[#allocation7 + $0x3bc] sm:$0xf]
    %v913 = vld [vmem:[#allocation7 + $0x3c0] sm:$0xf]
    %v914 = vld [vmem:[#allocation7 + $0x3c4] sm:$0xf]
    %v915 = vld [vmem:[#allocation7 + $0x3c8] sm:$0xf]
    %v916 = vld [vmem:[#allocation7 + $0x3cc] sm:$0xf]
    %v917 = vld [vmem:[#allocation7 + $0x3d0] sm:$0xf]
    %v918 = vld [vmem:[#allocation7 + $0x3d4] sm:$0xf]
    %v919 = vld [vmem:[#allocation7 + $0x3d8] sm:$0xf]
    %v920 = vld [vmem:[#allocation7 + $0x3dc] sm:$0xf]
    %v921 = vld [vmem:[#allocation7 + $0x3e0] sm:$0xf]
    %v922 = vld [vmem:[#allocation7 + $0x3e4] sm:$0xf]
    %v923 = vld [vmem:[#allocation7 + $0x3e8] sm:$0xf]
    %v924 = vld [vmem:[#allocation7 + $0x3ec] sm:$0xf]
    %v925 = vld [vmem:[#allocation7 + $0x3f0] sm:$0xf]
    %v926 = vld [vmem:[#allocation7 + $0x3f4] sm:$0xf]
    %v927 = vld [vmem:[#allocation7 + $0x3f8] sm:$0xf]
    %v928 = vld [vmem:[#allocation7 + $0x3fc] sm:$0xf]
    %v929 = vld [vmem:[%s4] sm:$0x1]
    %v931 = vlaneseq
    %v932 = vshrl.u32 %v931, 7
    %v933 = vsub.s32 0, %v932
    %v934 = vrot.slane %v929, %v933
    %v1192 = vunpack.c.l.b16 %v673
    %v1193 = vunpack.c.l.b16 %v674
    %v1194 = vunpack.c.l.b16 %v675
    %v1195 = vunpack.c.l.b16 %v676
    %v1196 = vunpack.c.l.b16 %v677
    %v1197 = vunpack.c.l.b16 %v678
    %v1198 = vunpack.c.l.b16 %v679
    %v1199 = vunpack.c.l.b16 %v680
    %v1200 = vunpack.c.l.b16 %v681
    %v1201 = vunpack.c.l.b16 %v682
    %v1202 = vunpack.c.l.b16 %v683
    %v1203 = vunpack.c.l.b16 %v684
    %v1204 = vunpack.c.l.b16 %v685
    %v1205 = vunpack.c.l.b16 %v686
    %v1206 = vunpack.c.l.b16 %v687
    %v1207 = vunpack.c.l.b16 %v688
    %v1208 = vunpack.c.l.b16 %v689
    %v1209 = vunpack.c.l.b16 %v690
    %v1210 = vunpack.c.l.b16 %v691
    %v1211 = vunpack.c.l.b16 %v692
    %v1212 = vunpack.c.l.b16 %v693
    %v1213 = vunpack.c.l.b16 %v694
    %v1214 = vunpack.c.l.b16 %v695
    %v1215 = vunpack.c.l.b16 %v696
    %v1216 = vunpack.c.l.b16 %v697
    %v1217 = vunpack.c.l.b16 %v698
    %v1218 = vunpack.c.l.b16 %v699
    %v1219 = vunpack.c.l.b16 %v700
    %v1220 = vunpack.c.l.b16 %v701
    %v1221 = vunpack.c.l.b16 %v702
    %v1222 = vunpack.c.l.b16 %v703
    %v1223 = vunpack.c.l.b16 %v704
    %v1224 = vunpack.c.l.b16 %v705
    %v1225 = vunpack.c.l.b16 %v706
    %v1226 = vunpack.c.l.b16 %v707
    %v1227 = vunpack.c.l.b16 %v708
    %v1228 = vunpack.c.l.b16 %v709
    %v1229 = vunpack.c.l.b16 %v710
    %v1230 = vunpack.c.l.b16 %v711
    %v1231 = vunpack.c.l.b16 %v712
    %v1232 = vunpack.c.l.b16 %v713
    %v1233 = vunpack.c.l.b16 %v714
    %v1234 = vunpack.c.l.b16 %v715
    %v1235 = vunpack.c.l.b16 %v716
    %v1236 = vunpack.c.l.b16 %v717
    %v1237 = vunpack.c.l.b16 %v718
    %v1238 = vunpack.c.l.b16 %v719
    %v1239 = vunpack.c.l.b16 %v720
    %v1240 = vunpack.c.l.b16 %v721
    %v1241 = vunpack.c.l.b16 %v722
    %v1242 = vunpack.c.l.b16 %v723
    %v1243 = vunpack.c.l.b16 %v724
    %v1244 = vunpack.c.l.b16 %v725
    %v1245 = vunpack.c.l.b16 %v726
    %v1246 = vunpack.c.l.b16 %v727
    %v1247 = vunpack.c.l.b16 %v728
    %v1248 = vunpack.c.l.b16 %v729
    %v1249 = vunpack.c.l.b16 %v730
    %v1250 = vunpack.c.l.b16 %v731
    %v1251 = vunpack.c.l.b16 %v732
    %v1252 = vunpack.c.l.b16 %v733
    %v1253 = vunpack.c.l.b16 %v734
    %v1254 = vunpack.c.l.b16 %v735
    %v1255 = vunpack.c.l.b16 %v736
    %v1256 = vunpack.c.l.b16 %v737
    %v1257 = vunpack.c.l.b16 %v738
    %v1258 = vunpack.c.l.b16 %v739
    %v1259 = vunpack.c.l.b16 %v740
    %v1260 = vunpack.c.l.b16 %v741
    %v1261 = vunpack.c.l.b16 %v742
    %v1262 = vunpack.c.l.b16 %v743
    %v1263 = vunpack.c.l.b16 %v744
    %v1264 = vunpack.c.l.b16 %v745
    %v1265 = vunpack.c.l.b16 %v746
    %v1266 = vunpack.c.l.b16 %v747
    %v1267 = vunpack.c.l.b16 %v748
    %v1268 = vunpack.c.l.b16 %v749
    %v1269 = vunpack.c.l.b16 %v750
    %v1270 = vunpack.c.l.b16 %v751
    %v1271 = vunpack.c.l.b16 %v752
    %v1272 = vunpack.c.l.b16 %v753
    %v1273 = vunpack.c.l.b16 %v754
    %v1274 = vunpack.c.l.b16 %v755
    %v1275 = vunpack.c.l.b16 %v756
    %v1276 = vunpack.c.l.b16 %v757
    %v1277 = vunpack.c.l.b16 %v758
    %v1278 = vunpack.c.l.b16 %v759
    %v1279 = vunpack.c.l.b16 %v760
    %v1280 = vunpack.c.l.b16 %v761
    %v1281 = vunpack.c.l.b16 %v762
    %v1282 = vunpack.c.l.b16 %v763
    %v1283 = vunpack.c.l.b16 %v764
    %v1284 = vunpack.c.l.b16 %v765
    %v1285 = vunpack.c.l.b16 %v766
    %v1286 = vunpack.c.l.b16 %v767
    %v1287 = vunpack.c.l.b16 %v768
    %v1288 = vunpack.c.l.b16 %v769
    %v1289 = vunpack.c.l.b16 %v770
    %v1290 = vunpack.c.l.b16 %v771
    %v1291 = vunpack.c.l.b16 %v772
    %v1292 = vunpack.c.l.b16 %v773
    %v1293 = vunpack.c.l.b16 %v774
    %v1294 = vunpack.c.l.b16 %v775
    %v1295 = vunpack.c.l.b16 %v776
    %v1296 = vunpack.c.l.b16 %v777
    %v1297 = vunpack.c.l.b16 %v778
    %v1298 = vunpack.c.l.b16 %v779
    %v1299 = vunpack.c.l.b16 %v780
    %v1300 = vunpack.c.l.b16 %v781
    %v1301 = vunpack.c.l.b16 %v782
    %v1302 = vunpack.c.l.b16 %v783
    %v1303 = vunpack.c.l.b16 %v784
    %v1304 = vunpack.c.l.b16 %v785
    %v1305 = vunpack.c.l.b16 %v786
    %v1306 = vunpack.c.l.b16 %v787
    %v1307 = vunpack.c.l.b16 %v788
    %v1308 = vunpack.c.l.b16 %v789
    %v1309 = vunpack.c.l.b16 %v790
    %v1310 = vunpack.c.l.b16 %v791
    %v1311 = vunpack.c.l.b16 %v792
    %v1312 = vunpack.c.l.b16 %v793
    %v1313 = vunpack.c.l.b16 %v794
    %v1314 = vunpack.c.l.b16 %v795
    %v1315 = vunpack.c.l.b16 %v796
    %v1316 = vunpack.c.l.b16 %v797
    %v1317 = vunpack.c.l.b16 %v798
    %v1318 = vunpack.c.l.b16 %v799
    %v1319 = vunpack.c.l.b16 %v800
    %v1320 = vunpack.c.l.b16 %v801
    %v1321 = vunpack.c.l.b16 %v802
    %v1322 = vunpack.c.l.b16 %v803
    %v1323 = vunpack.c.l.b16 %v804
    %v1324 = vunpack.c.l.b16 %v805
    %v1325 = vunpack.c.l.b16 %v806
    %v1326 = vunpack.c.l.b16 %v807
    %v1327 = vunpack.c.l.b16 %v808
    %v1328 = vunpack.c.l.b16 %v809
    %v1329 = vunpack.c.l.b16 %v810
    %v1330 = vunpack.c.l.b16 %v811
    %v1331 = vunpack.c.l.b16 %v812
    %v1332 = vunpack.c.l.b16 %v813
    %v1333 = vunpack.c.l.b16 %v814
    %v1334 = vunpack.c.l.b16 %v815
    %v1335 = vunpack.c.l.b16 %v816
    %v1336 = vunpack.c.l.b16 %v817
    %v1337 = vunpack.c.l.b16 %v818
    %v1338 = vunpack.c.l.b16 %v819
    %v1339 = vunpack.c.l.b16 %v820
    %v1340 = vunpack.c.l.b16 %v821
    %v1341 = vunpack.c.l.b16 %v822
    %v1342 = vunpack.c.l.b16 %v823
    %v1343 = vunpack.c.l.b16 %v824
    %v1344 = vunpack.c.l.b16 %v825
    %v1345 = vunpack.c.l.b16 %v826
    %v1346 = vunpack.c.l.b16 %v827
    %v1347 = vunpack.c.l.b16 %v828
    %v1348 = vunpack.c.l.b16 %v829
    %v1349 = vunpack.c.l.b16 %v830
    %v1350 = vunpack.c.l.b16 %v831
    %v1351 = vunpack.c.l.b16 %v832
    %v1352 = vunpack.c.l.b16 %v833
    %v1353 = vunpack.c.l.b16 %v834
    %v1354 = vunpack.c.l.b16 %v835
    %v1355 = vunpack.c.l.b16 %v836
    %v1356 = vunpack.c.l.b16 %v837
    %v1357 = vunpack.c.l.b16 %v838
    %v1358 = vunpack.c.l.b16 %v839
    %v1359 = vunpack.c.l.b16 %v840
    %v1360 = vunpack.c.l.b16 %v841
    %v1361 = vunpack.c.l.b16 %v842
    %v1362 = vunpack.c.l.b16 %v843
    %v1363 = vunpack.c.l.b16 %v844
    %v1364 = vunpack.c.l.b16 %v845
    %v1365 = vunpack.c.l.b16 %v846
    %v1366 = vunpack.c.l.b16 %v847
    %v1367 = vunpack.c.l.b16 %v848
    %v1368 = vunpack.c.l.b16 %v849
    %v1369 = vunpack.c.l.b16 %v850
    %v1370 = vunpack.c.l.b16 %v851
    %v1371 = vunpack.c.l.b16 %v852
    %v1372 = vunpack.c.l.b16 %v853
    %v1373 = vunpack.c.l.b16 %v854
    %v1374 = vunpack.c.l.b16 %v855
    %v1375 = vunpack.c.l.b16 %v856
    %v1376 = vunpack.c.l.b16 %v857
    %v1377 = vunpack.c.l.b16 %v858
    %v1378 = vunpack.c.l.b16 %v859
    %v1379 = vunpack.c.l.b16 %v860
    %v1380 = vunpack.c.l.b16 %v861
    %v1381 = vunpack.c.l.b16 %v862
    %v1382 = vunpack.c.l.b16 %v863
    %v1383 = vunpack.c.l.b16 %v864
    %v1384 = vunpack.c.l.b16 %v865
    %v1385 = vunpack.c.l.b16 %v866
    %v1386 = vunpack.c.l.b16 %v867
    %v1387 = vunpack.c.l.b16 %v868
    %v1388 = vunpack.c.l.b16 %v869
    %v1389 = vunpack.c.l.b16 %v870
    %v1390 = vunpack.c.l.b16 %v871
    %v1391 = vunpack.c.l.b16 %v872
    %v1392 = vunpack.c.l.b16 %v873
    %v1393 = vunpack.c.l.b16 %v874
    %v1394 = vunpack.c.l.b16 %v875
    %v1395 = vunpack.c.l.b16 %v876
    %v1396 = vunpack.c.l.b16 %v877
    %v1397 = vunpack.c.l.b16 %v878
    %v1398 = vunpack.c.l.b16 %v879
    %v1399 = vunpack.c.l.b16 %v880
    %v1400 = vunpack.c.l.b16 %v881
    %v1401 = vunpack.c.l.b16 %v882
    %v1402 = vunpack.c.l.b16 %v883
    %v1403 = vunpack.c.l.b16 %v884
    %v1404 = vunpack.c.l.b16 %v885
    %v1405 = vunpack.c.l.b16 %v886
    %v1406 = vunpack.c.l.b16 %v887
    %v1407 = vunpack.c.l.b16 %v888
    %v1408 = vunpack.c.l.b16 %v889
    %v1409 = vunpack.c.l.b16 %v890
    %v1410 = vunpack.c.l.b16 %v891
    %v1411 = vunpack.c.l.b16 %v892
    %v1412 = vunpack.c.l.b16 %v893
    %v1413 = vunpack.c.l.b16 %v894
    %v1414 = vunpack.c.l.b16 %v895
    %v1415 = vunpack.c.l.b16 %v896
    %v1416 = vunpack.c.l.b16 %v897
    %v1417 = vunpack.c.l.b16 %v898
    %v1418 = vunpack.c.l.b16 %v899
    %v1419 = vunpack.c.l.b16 %v900
    %v1420 = vunpack.c.l.b16 %v901
    %v1421 = vunpack.c.l.b16 %v902
    %v1422 = vunpack.c.l.b16 %v903
    %v1423 = vunpack.c.l.b16 %v904
    %v1424 = vunpack.c.l.b16 %v905
    %v1425 = vunpack.c.l.b16 %v906
    %v1426 = vunpack.c.l.b16 %v907
    %v1427 = vunpack.c.l.b16 %v908
    %v1428 = vunpack.c.l.b16 %v909
    %v1429 = vunpack.c.l.b16 %v910
    %v1430 = vunpack.c.l.b16 %v911
    %v1431 = vunpack.c.l.b16 %v912
    %v1432 = vunpack.c.l.b16 %v913
    %v1433 = vunpack.c.l.b16 %v914
    %v1434 = vunpack.c.l.b16 %v915
    %v1435 = vunpack.c.l.b16 %v916
    %v1436 = vunpack.c.l.b16 %v917
    %v1437 = vunpack.c.l.b16 %v918
    %v1438 = vunpack.c.l.b16 %v919
    %v1439 = vunpack.c.l.b16 %v920
    %v1440 = vunpack.c.l.b16 %v921
    %v1441 = vunpack.c.l.b16 %v922
    %v1442 = vunpack.c.l.b16 %v923
    %v1443 = vunpack.c.l.b16 %v924
    %v1444 = vunpack.c.l.b16 %v925
    %v1445 = vunpack.c.l.b16 %v926
    %v1446 = vunpack.c.l.b16 %v927
    %v1447 = vunpack.c.l.b16 %v928
    %v1448 = vpack.c.b16 %v1193, %v1192
    %v1449 = vpack.c.b16 %v1195, %v1194
    %v1450 = vpack.c.b16 %v1197, %v1196
    %v1451 = vpack.c.b16 %v1199, %v1198
    %v1452 = vpack.c.b16 %v1201, %v1200
    %v1453 = vpack.c.b16 %v1203, %v1202
    %v1454 = vpack.c.b16 %v1205, %v1204
    %v1455 = vpack.c.b16 %v1207, %v1206
    %v1456 = vpack.c.b16 %v1209, %v1208
    %v1457 = vpack.c.b16 %v1211, %v1210
    %v1458 = vpack.c.b16 %v1213, %v1212
    %v1459 = vpack.c.b16 %v1215, %v1214
    %v1460 = vpack.c.b16 %v1217, %v1216
    %v1461 = vpack.c.b16 %v1219, %v1218
    %v1462 = vpack.c.b16 %v1221, %v1220
    %v1463 = vpack.c.b16 %v1223, %v1222
    %v1464 = vpack.c.b16 %v1225, %v1224
    %v1465 = vpack.c.b16 %v1227, %v1226
    %v1466 = vpack.c.b16 %v1229, %v1228
    %v1467 = vpack.c.b16 %v1231, %v1230
    %v1468 = vpack.c.b16 %v1233, %v1232
    %v1469 = vpack.c.b16 %v1235, %v1234
    %v1470 = vpack.c.b16 %v1237, %v1236
    %v1471 = vpack.c.b16 %v1239, %v1238
    %v1472 = vpack.c.b16 %v1241, %v1240
    %v1473 = vpack.c.b16 %v1243, %v1242
    %v1474 = vpack.c.b16 %v1245, %v1244
    %v1475 = vpack.c.b16 %v1247, %v1246
    %v1476 = vpack.c.b16 %v1249, %v1248
    %v1477 = vpack.c.b16 %v1251, %v1250
    %v1478 = vpack.c.b16 %v1253, %v1252
    %v1479 = vpack.c.b16 %v1255, %v1254
    %v1480 = vpack.c.b16 %v1257, %v1256
    %v1481 = vpack.c.b16 %v1259, %v1258
    %v1482 = vpack.c.b16 %v1261, %v1260
    %v1483 = vpack.c.b16 %v1263, %v1262
    %v1484 = vpack.c.b16 %v1265, %v1264
    %v1485 = vpack.c.b16 %v1267, %v1266
    %v1486 = vpack.c.b16 %v1269, %v1268
    %v1487 = vpack.c.b16 %v1271, %v1270
    %v1488 = vpack.c.b16 %v1273, %v1272
    %v1489 = vpack.c.b16 %v1275, %v1274
    %v1490 = vpack.c.b16 %v1277, %v1276
    %v1491 = vpack.c.b16 %v1279, %v1278
    %v1492 = vpack.c.b16 %v1281, %v1280
    %v1493 = vpack.c.b16 %v1283, %v1282
    %v1494 = vpack.c.b16 %v1285, %v1284
    %v1495 = vpack.c.b16 %v1287, %v1286
    %v1496 = vpack.c.b16 %v1289, %v1288
    %v1497 = vpack.c.b16 %v1291, %v1290
    %v1498 = vpack.c.b16 %v1293, %v1292
    %v1499 = vpack.c.b16 %v1295, %v1294
    %v1500 = vpack.c.b16 %v1297, %v1296
    %v1501 = vpack.c.b16 %v1299, %v1298
    %v1502 = vpack.c.b16 %v1301, %v1300
    %v1503 = vpack.c.b16 %v1303, %v1302
    %v1504 = vpack.c.b16 %v1305, %v1304
    %v1505 = vpack.c.b16 %v1307, %v1306
    %v1506 = vpack.c.b16 %v1309, %v1308
    %v1507 = vpack.c.b16 %v1311, %v1310
    %v1508 = vpack.c.b16 %v1313, %v1312
    %v1509 = vpack.c.b16 %v1315, %v1314
    %v1510 = vpack.c.b16 %v1317, %v1316
    %v1511 = vpack.c.b16 %v1319, %v1318
    %v1512 = vpack.c.b16 %v1321, %v1320
    %v1513 = vpack.c.b16 %v1323, %v1322
    %v1514 = vpack.c.b16 %v1325, %v1324
    %v1515 = vpack.c.b16 %v1327, %v1326
    %v1516 = vpack.c.b16 %v1329, %v1328
    %v1517 = vpack.c.b16 %v1331, %v1330
    %v1518 = vpack.c.b16 %v1333, %v1332
    %v1519 = vpack.c.b16 %v1335, %v1334
    %v1520 = vpack.c.b16 %v1337, %v1336
    %v1521 = vpack.c.b16 %v1339, %v1338
    %v1522 = vpack.c.b16 %v1341, %v1340
    %v1523 = vpack.c.b16 %v1343, %v1342
    %v1524 = vpack.c.b16 %v1345, %v1344
    %v1525 = vpack.c.b16 %v1347, %v1346
    %v1526 = vpack.c.b16 %v1349, %v1348
    %v1527 = vpack.c.b16 %v1351, %v1350
    %v1528 = vpack.c.b16 %v1353, %v1352
    %v1529 = vpack.c.b16 %v1355, %v1354
    %v1530 = vpack.c.b16 %v1357, %v1356
    %v1531 = vpack.c.b16 %v1359, %v1358
    %v1532 = vpack.c.b16 %v1361, %v1360
    %v1533 = vpack.c.b16 %v1363, %v1362
    %v1534 = vpack.c.b16 %v1365, %v1364
    %v1535 = vpack.c.b16 %v1367, %v1366
    %v1536 = vpack.c.b16 %v1369, %v1368
    %v1537 = vpack.c.b16 %v1371, %v1370
    %v1538 = vpack.c.b16 %v1373, %v1372
    %v1539 = vpack.c.b16 %v1375, %v1374
    %v1540 = vpack.c.b16 %v1377, %v1376
    %v1541 = vpack.c.b16 %v1379, %v1378
    %v1542 = vpack.c.b16 %v1381, %v1380
    %v1543 = vpack.c.b16 %v1383, %v1382
    %v1544 = vpack.c.b16 %v1385, %v1384
    %v1545 = vpack.c.b16 %v1387, %v1386
    %v1546 = vpack.c.b16 %v1389, %v1388
    %v1547 = vpack.c.b16 %v1391, %v1390
    %v1548 = vpack.c.b16 %v1393, %v1392
    %v1549 = vpack.c.b16 %v1395, %v1394
    %v1550 = vpack.c.b16 %v1397, %v1396
    %v1551 = vpack.c.b16 %v1399, %v1398
    %v1552 = vpack.c.b16 %v1401, %v1400
    %v1553 = vpack.c.b16 %v1403, %v1402
    %v1554 = vpack.c.b16 %v1405, %v1404
    %v1555 = vpack.c.b16 %v1407, %v1406
    %v1556 = vpack.c.b16 %v1409, %v1408
    %v1557 = vpack.c.b16 %v1411, %v1410
    %v1558 = vpack.c.b16 %v1413, %v1412
    %v1559 = vpack.c.b16 %v1415, %v1414
    %v1560 = vpack.c.b16 %v1417, %v1416
    %v1561 = vpack.c.b16 %v1419, %v1418
    %v1562 = vpack.c.b16 %v1421, %v1420
    %v1563 = vpack.c.b16 %v1423, %v1422
    %v1564 = vpack.c.b16 %v1425, %v1424
    %v1565 = vpack.c.b16 %v1427, %v1426
    %v1566 = vpack.c.b16 %v1429, %v1428
    %v1567 = vpack.c.b16 %v1431, %v1430
    %v1568 = vpack.c.b16 %v1433, %v1432
    %v1569 = vpack.c.b16 %v1435, %v1434
    %v1570 = vpack.c.b16 %v1437, %v1436
    %v1571 = vpack.c.b16 %v1439, %v1438
    %v1572 = vpack.c.b16 %v1441, %v1440
    %v1573 = vpack.c.b16 %v1443, %v1442
    %v1574 = vpack.c.b16 %v1445, %v1444
    %v1575 = vpack.c.b16 %v1447, %v1446
    %1704 = vmatprep.subr.bf16.mxu0 0
    %1705 = vmatpush1.bf16.msra.mxu0 %v1448
    %1706 = vmatprep.subr.bf16.mxu0 0
    %1707 = vmatpush1.bf16.msra.mxu0 %v1449
    %1708 = vmatprep.subr.bf16.mxu0 0
    %1709 = vmatpush1.bf16.msra.mxu0 %v1450
    %1710 = vmatprep.subr.bf16.mxu0 0
    %1711 = vmatpush1.bf16.msra.mxu0 %v1451
    %1712 = vmatprep.subr.bf16.mxu0 0
    %1713 = vmatpush1.bf16.msra.mxu0 %v1452
    %1714 = vmatprep.subr.bf16.mxu0 0
    %1715 = vmatpush1.bf16.msra.mxu0 %v1453
    %1716 = vmatprep.subr.bf16.mxu0 0
    %1717 = vmatpush1.bf16.msra.mxu0 %v1454
    %1718 = vmatprep.subr.bf16.mxu0 0
    %1719 = vmatpush1.bf16.msra.mxu0 %v1455
    %1720 = vmatprep.subr.bf16.mxu0 0
    %1721 = vmatpush1.bf16.msra.mxu0 %v1456
    %1722 = vmatprep.subr.bf16.mxu0 0
    %1723 = vmatpush1.bf16.msra.mxu0 %v1457
    %1724 = vmatprep.subr.bf16.mxu0 0
    %1725 = vmatpush1.bf16.msra.mxu0 %v1458
    %1726 = vmatprep.subr.bf16.mxu0 0
    %1727 = vmatpush1.bf16.msra.mxu0 %v1459
    %1728 = vmatprep.subr.bf16.mxu0 0
    %1729 = vmatpush1.bf16.msra.mxu0 %v1460
    %1730 = vmatprep.subr.bf16.mxu0 0
    %1731 = vmatpush1.bf16.msra.mxu0 %v1461
    %1732 = vmatprep.subr.bf16.mxu0 0
    %1733 = vmatpush1.bf16.msra.mxu0 %v1462
    %1734 = vmatprep.subr.bf16.mxu0 0
    %1735 = vmatpush1.bf16.msra.mxu0 %v1463
    %1736 = vmatprep.mubr.bf16.mxu0 %v658
    %1737 = vmatmul.mubr.bf16.gmra.mrb[0].mxu0 %v657
    %v1738 = vpop.f32.mrb[0].mxu0
    %v1739 = vadd.f32 %v934, %v1738
    %v1740 = vpop.f32.mrb[0].mxu0
    %v1741 = vpop.f32.mrb[0].mxu0
    %v1742 = vpop.f32.mrb[0].mxu0
    %1743 = vdwg.mxu0
    %1744 = vmatprep.subr.bf16.mxu0 0
    %1745 = vmatpush1.bf16.msra.mxu0 %v1464
    %1746 = vmatprep.subr.bf16.mxu0 0
    %1747 = vmatpush1.bf16.msra.mxu0 %v1465
    %1748 = vmatprep.subr.bf16.mxu0 0
    %1749 = vmatpush1.bf16.msra.mxu0 %v1466
    %1750 = vmatprep.subr.bf16.mxu0 0
    %1751 = vmatpush1.bf16.msra.mxu0 %v1467
    %1752 = vmatprep.subr.bf16.mxu0 0
    %1753 = vmatpush1.bf16.msra.mxu0 %v1468
    %1754 = vmatprep.subr.bf16.mxu0 0
    %1755 = vmatpush1.bf16.msra.mxu0 %v1469
    %1756 = vmatprep.subr.bf16.mxu0 0
    %1757 = vmatpush1.bf16.msra.mxu0 %v1470
    %1758 = vmatprep.subr.bf16.mxu0 0
    %1759 = vmatpush1.bf16.msra.mxu0 %v1471
    %1760 = vmatprep.subr.bf16.mxu0 0
    %1761 = vmatpush1.bf16.msra.mxu0 %v1472
    %1762 = vmatprep.subr.bf16.mxu0 0
    %1763 = vmatpush1.bf16.msra.mxu0 %v1473
    %1764 = vmatprep.subr.bf16.mxu0 0
    %1765 = vmatpush1.bf16.msra.mxu0 %v1474
    %1766 = vmatprep.subr.bf16.mxu0 0
    %1767 = vmatpush1.bf16.msra.mxu0 %v1475
    %1768 = vmatprep.subr.bf16.mxu0 0
    %1769 = vmatpush1.bf16.msra.mxu0 %v1476
    %1770 = vmatprep.subr.bf16.mxu0 0
    %1771 = vmatpush1.bf16.msra.mxu0 %v1477
    %1772 = vmatprep.subr.bf16.mxu0 0
    %1773 = vmatpush1.bf16.msra.mxu0 %v1478
    %1774 = vmatprep.subr.bf16.mxu0 0
    %1775 = vmatpush1.bf16.msra.mxu0 %v1479
    %1776 = vmatprep.mubr.bf16.mxu0 %v660
    %1777 = vmatmul.mubr.bf16.gmra.mrb[0].mxu0 %v659
    %v1778 = vpop.f32.mrb[0].mxu0
    %v1779 = vadd.f32 %v1739, %v1778
    %v1780 = vpop.f32.mrb[0].mxu0
    %v1781 = vpop.f32.mrb[0].mxu0
    %v1782 = vpop.f32.mrb[0].mxu0
    %1783 = vdwg.mxu0
    %1784 = vmatprep.subr.bf16.mxu0 0
    %1785 = vmatpush1.bf16.msra.mxu0 %v1480
    %1786 = vmatprep.subr.bf16.mxu0 0
    %1787 = vmatpush1.bf16.msra.mxu0 %v1481
    %1788 = vmatprep.subr.bf16.mxu0 0
    %1789 = vmatpush1.bf16.msra.mxu0 %v1482
    %1790 = vmatprep.subr.bf16.mxu0 0
    %1791 = vmatpush1.bf16.msra.mxu0 %v1483
    %1792 = vmatprep.subr.bf16.mxu0 0
    %1793 = vmatpush1.bf16.msra.mxu0 %v1484
    %1794 = vmatprep.subr.bf16.mxu0 0
    %1795 = vmatpush1.bf16.msra.mxu0 %v1485
    %1796 = vmatprep.subr.bf16.mxu0 0
    %1797 = vmatpush1.bf16.msra.mxu0 %v1486
    %1798 = vmatprep.subr.bf16.mxu0 0
    %1799 = vmatpush1.bf16.msra.mxu0 %v1487
    %1800 = vmatprep.subr.bf16.mxu0 0
    %1801 = vmatpush1.bf16.msra.mxu0 %v1488
    %1802 = vmatprep.subr.bf16.mxu0 0
    %1803 = vmatpush1.bf16.msra.mxu0 %v1489
    %1804 = vmatprep.subr.bf16.mxu0 0
    %1805 = vmatpush1.bf16.msra.mxu0 %v1490
    %1806 = vmatprep.subr.bf16.mxu0 0
    %1807 = vmatpush1.bf16.msra.mxu0 %v1491
    %1808 = vmatprep.subr.bf16.mxu0 0
    %1809 = vmatpush1.bf16.msra.mxu0 %v1492
    %1810 = vmatprep.subr.bf16.mxu0 0
    %1811 = vmatpush1.bf16.msra.mxu0 %v1493
    %1812 = vmatprep.subr.bf16.mxu0 0
    %1813 = vmatpush1.bf16.msra.mxu0 %v1494
    %1814 = vmatprep.subr.bf16.mxu0 0
    %1815 = vmatpush1.bf16.msra.mxu0 %v1495
    %1816 = vmatprep.mubr.bf16.mxu0 %v662
    %1817 = vmatmul.mubr.bf16.gmra.mrb[0].mxu0 %v661
    %v1818 = vpop.f32.mrb[0].mxu0
    %v1819 = vadd.f32 %v1779, %v1818
    %v1820 = vpop.f32.mrb[0].mxu0
    %v1821 = vpop.f32.mrb[0].mxu0
    %v1822 = vpop.f32.mrb[0].mxu0
    %1823 = vdwg.mxu0
    %1824 = vmatprep.subr.bf16.mxu0 0
    %1825 = vmatpush1.bf16.msra.mxu0 %v1496
    %1826 = vmatprep.subr.bf16.mxu0 0
    %1827 = vmatpush1.bf16.msra.mxu0 %v1497
    %1828 = vmatprep.subr.bf16.mxu0 0
    %1829 = vmatpush1.bf16.msra.mxu0 %v1498
    %1830 = vmatprep.subr.bf16.mxu0 0
    %1831 = vmatpush1.bf16.msra.mxu0 %v1499
    %1832 = vmatprep.subr.bf16.mxu0 0
    %1833 = vmatpush1.bf16.msra.mxu0 %v1500
    %1834 = vmatprep.subr.bf16.mxu0 0
    %1835 = vmatpush1.bf16.msra.mxu0 %v1501
    %1836 = vmatprep.subr.bf16.mxu0 0
    %1837 = vmatpush1.bf16.msra.mxu0 %v1502
    %1838 = vmatprep.subr.bf16.mxu0 0
    %1839 = vmatpush1.bf16.msra.mxu0 %v1503
    %1840 = vmatprep.subr.bf16.mxu0 0
    %1841 = vmatpush1.bf16.msra.mxu0 %v1504
    %1842 = vmatprep.subr.bf16.mxu0 0
    %1843 = vmatpush1.bf16.msra.mxu0 %v1505
    %1844 = vmatprep.subr.bf16.mxu0 0
    %1845 = vmatpush1.bf16.msra.mxu0 %v1506
    %1846 = vmatprep.subr.bf16.mxu0 0
    %1847 = vmatpush1.bf16.msra.mxu0 %v1507
    %1848 = vmatprep.subr.bf16.mxu0 0
    %1849 = vmatpush1.bf16.msra.mxu0 %v1508
    %1850 = vmatprep.subr.bf16.mxu0 0
    %1851 = vmatpush1.bf16.msra.mxu0 %v1509
    %1852 = vmatprep.subr.bf16.mxu0 0
    %1853 = vmatpush1.bf16.msra.mxu0 %v1510
    %1854 = vmatprep.subr.bf16.mxu0 0
    %1855 = vmatpush1.bf16.msra.mxu0 %v1511
    %1856 = vmatprep.mubr.bf16.mxu0 %v664
    %1857 = vmatmul.mubr.bf16.gmra.mrb[0].mxu0 %v663
    %v1858 = vpop.f32.mrb[0].mxu0
    %v1859 = vadd.f32 %v1819, %v1858
    %v1860 = vpop.f32.mrb[0].mxu0
    %v1861 = vpop.f32.mrb[0].mxu0
    %v1862 = vpop.f32.mrb[0].mxu0
    %1863 = vdwg.mxu0
    %1864 = vmatprep.subr.bf16.mxu0 0
    %1865 = vmatpush1.bf16.msra.mxu0 %v1512
    %1866 = vmatprep.subr.bf16.mxu0 0
    %1867 = vmatpush1.bf16.msra.mxu0 %v1513
    %1868 = vmatprep.subr.bf16.mxu0 0
    %1869 = vmatpush1.bf16.msra.mxu0 %v1514
    %1870 = vmatprep.subr.bf16.mxu0 0
    %1871 = vmatpush1.bf16.msra.mxu0 %v1515
    %1872 = vmatprep.subr.bf16.mxu0 0
    %1873 = vmatpush1.bf16.msra.mxu0 %v1516
    %1874 = vmatprep.subr.bf16.mxu0 0
    %1875 = vmatpush1.bf16.msra.mxu0 %v1517
    %1876 = vmatprep.subr.bf16.mxu0 0
    %1877 = vmatpush1.bf16.msra.mxu0 %v1518
    %1878 = vmatprep.subr.bf16.mxu0 0
    %1879 = vmatpush1.bf16.msra.mxu0 %v1519
    %1880 = vmatprep.subr.bf16.mxu0 0
    %1881 = vmatpush1.bf16.msra.mxu0 %v1520
    %1882 = vmatprep.subr.bf16.mxu0 0
    %1883 = vmatpush1.bf16.msra.mxu0 %v1521
    %1884 = vmatprep.subr.bf16.mxu0 0
    %1885 = vmatpush1.bf16.msra.mxu0 %v1522
    %1886 = vmatprep.subr.bf16.mxu0 0
    %1887 = vmatpush1.bf16.msra.mxu0 %v1523
    %1888 = vmatprep.subr.bf16.mxu0 0
    %1889 = vmatpush1.bf16.msra.mxu0 %v1524
    %1890 = vmatprep.subr.bf16.mxu0 0
    %1891 = vmatpush1.bf16.msra.mxu0 %v1525
    %1892 = vmatprep.subr.bf16.mxu0 0
    %1893 = vmatpush1.bf16.msra.mxu0 %v1526
    %1894 = vmatprep.subr.bf16.mxu0 0
    %1895 = vmatpush1.bf16.msra.mxu0 %v1527
    %1896 = vmatprep.mubr.bf16.mxu0 %v666
    %1897 = vmatmul.mubr.bf16.gmra.mrb[0].mxu0 %v665
    %v1898 = vpop.f32.mrb[0].mxu0
    %v1899 = vadd.f32 %v1859, %v1898
    %v1900 = vpop.f32.mrb[0].mxu0
    %v1901 = vpop.f32.mrb[0].mxu0
    %v1902 = vpop.f32.mrb[0].mxu0
    %1903 = vdwg.mxu0
    %1904 = vmatprep.subr.bf16.mxu0 0
    %1905 = vmatpush1.bf16.msra.mxu0 %v1528
    %1906 = vmatprep.subr.bf16.mxu0 0
    %1907 = vmatpush1.bf16.msra.mxu0 %v1529
    %1908 = vmatprep.subr.bf16.mxu0 0
    %1909 = vmatpush1.bf16.msra.mxu0 %v1530
    %1910 = vmatprep.subr.bf16.mxu0 0
    %1911 = vmatpush1.bf16.msra.mxu0 %v1531
    %1912 = vmatprep.subr.bf16.mxu0 0
    %1913 = vmatpush1.bf16.msra.mxu0 %v1532
    %1914 = vmatprep.subr.bf16.mxu0 0
    %1915 = vmatpush1.bf16.msra.mxu0 %v1533
    %1916 = vmatprep.subr.bf16.mxu0 0
    %1917 = vmatpush1.bf16.msra.mxu0 %v1534
    %1918 = vmatprep.subr.bf16.mxu0 0
    %1919 = vmatpush1.bf16.msra.mxu0 %v1535
    %1920 = vmatprep.subr.bf16.mxu0 0
    %1921 = vmatpush1.bf16.msra.mxu0 %v1536
    %1922 = vmatprep.subr.bf16.mxu0 0
    %1923 = vmatpush1.bf16.msra.mxu0 %v1537
    %1924 = vmatprep.subr.bf16.mxu0 0
    %1925 = vmatpush1.bf16.msra.mxu0 %v1538
    %1926 = vmatprep.subr.bf16.mxu0 0
    %1927 = vmatpush1.bf16.msra.mxu0 %v1539
    %1928 = vmatprep.subr.bf16.mxu0 0
    %1929 = vmatpush1.bf16.msra.mxu0 %v1540
    %1930 = vmatprep.subr.bf16.mxu0 0
    %1931 = vmatpush1.bf16.msra.mxu0 %v1541
    %1932 = vmatprep.subr.bf16.mxu0 0
    %1933 = vmatpush1.bf16.msra.mxu0 %v1542
    %1934 = vmatprep.subr.bf16.mxu0 0
    %1935 = vmatpush1.bf16.msra.mxu0 %v1543
    %1936 = vmatprep.mubr.bf16.mxu0 %v668
    %1937 = vmatmul.mubr.bf16.gmra.mrb[0].mxu0 %v667
    %v1938 = vpop.f32.mrb[0].mxu0
    %v1939 = vadd.f32 %v1899, %v1938
    %v1940 = vpop.f32.mrb[0].mxu0
    %v1941 = vpop.f32.mrb[0].mxu0
    %v1942 = vpop.f32.mrb[0].mxu0
    %1943 = vdwg.mxu0
    %1944 = vmatprep.subr.bf16.mxu0 0
    %1945 = vmatpush1.bf16.msra.mxu0 %v1544
    %1946 = vmatprep.subr.bf16.mxu0 0
    %1947 = vmatpush1.bf16.msra.mxu0 %v1545
    %1948 = vmatprep.subr.bf16.mxu0 0
    %1949 = vmatpush1.bf16.msra.mxu0 %v1546
    %1950 = vmatprep.subr.bf16.mxu0 0
    %1951 = vmatpush1.bf16.msra.mxu0 %v1547
    %1952 = vmatprep.subr.bf16.mxu0 0
    %1953 = vmatpush1.bf16.msra.mxu0 %v1548
    %1954 = vmatprep.subr.bf16.mxu0 0
    %1955 = vmatpush1.bf16.msra.mxu0 %v1549
    %1956 = vmatprep.subr.bf16.mxu0 0
    %1957 = vmatpush1.bf16.msra.mxu0 %v1550
    %1958 = vmatprep.subr.bf16.mxu0 0
    %1959 = vmatpush1.bf16.msra.mxu0 %v1551
    %1960 = vmatprep.subr.bf16.mxu0 0
    %1961 = vmatpush1.bf16.msra.mxu0 %v1552
    %1962 = vmatprep.subr.bf16.mxu0 0
    %1963 = vmatpush1.bf16.msra.mxu0 %v1553
    %1964 = vmatprep.subr.bf16.mxu0 0
    %1965 = vmatpush1.bf16.msra.mxu0 %v1554
    %1966 = vmatprep.subr.bf16.mxu0 0
    %1967 = vmatpush1.bf16.msra.mxu0 %v1555
    %1968 = vmatprep.subr.bf16.mxu0 0
    %1969 = vmatpush1.bf16.msra.mxu0 %v1556
    %1970 = vmatprep.subr.bf16.mxu0 0
    %1971 = vmatpush1.bf16.msra.mxu0 %v1557
    %1972 = vmatprep.subr.bf16.mxu0 0
    %1973 = vmatpush1.bf16.msra.mxu0 %v1558
    %1974 = vmatprep.subr.bf16.mxu0 0
    %1975 = vmatpush1.bf16.msra.mxu0 %v1559
    %1976 = vmatprep.mubr.bf16.mxu0 %v670
    %1977 = vmatmul.mubr.bf16.gmra.mrb[0].mxu0 %v669
    %v1978 = vpop.f32.mrb[0].mxu0
    %v1979 = vadd.f32 %v1939, %v1978
    %v1980 = vpop.f32.mrb[0].mxu0
    %v1981 = vpop.f32.mrb[0].mxu0
    %v1982 = vpop.f32.mrb[0].mxu0
    %1983 = vdwg.mxu0
    %1984 = vmatprep.subr.bf16.mxu0 0
    %1985 = vmatpush1.bf16.msra.mxu0 %v1560
    %1986 = vmatprep.subr.bf16.mxu0 0
    %1987 = vmatpush1.bf16.msra.mxu0 %v1561
    %1988 = vmatprep.subr.bf16.mxu0 0
    %1989 = vmatpush1.bf16.msra.mxu0 %v1562
    %1990 = vmatprep.subr.bf16.mxu0 0
    %1991 = vmatpush1.bf16.msra.mxu0 %v1563
    %1992 = vmatprep.subr.bf16.mxu0 0
    %1993 = vmatpush1.bf16.msra.mxu0 %v1564
    %1994 = vmatprep.subr.bf16.mxu0 0
    %1995 = vmatpush1.bf16.msra.mxu0 %v1565
    %1996 = vmatprep.subr.bf16.mxu0 0
    %1997 = vmatpush1.bf16.msra.mxu0 %v1566
    %1998 = vmatprep.subr.bf16.mxu0 0
    %1999 = vmatpush1.bf16.msra.mxu0 %v1567
    %2000 = vmatprep.subr.bf16.mxu0 0
    %2001 = vmatpush1.bf16.msra.mxu0 %v1568
    %2002 = vmatprep.subr.bf16.mxu0 0
    %2003 = vmatpush1.bf16.msra.mxu0 %v1569
    %2004 = vmatprep.subr.bf16.mxu0 0
    %2005 = vmatpush1.bf16.msra.mxu0 %v1570
    %2006 = vmatprep.subr.bf16.mxu0 0
    %2007 = vmatpush1.bf16.msra.mxu0 %v1571
    %2008 = vmatprep.subr.bf16.mxu0 0
    %2009 = vmatpush1.bf16.msra.mxu0 %v1572
    %2010 = vmatprep.subr.bf16.mxu0 0
    %2011 = vmatpush1.bf16.msra.mxu0 %v1573
    %2012 = vmatprep.subr.bf16.mxu0 0
    %2013 = vmatpush1.bf16.msra.mxu0 %v1574
    %2014 = vmatprep.subr.bf16.mxu0 0
    %2015 = vmatpush1.bf16.msra.mxu0 %v1575
    %2016 = vmatprep.mubr.bf16.mxu0 %v672
    %2017 = vmatmul.mubr.bf16.gmra.mrb[0].mxu0 %v671
    %v2018 = vpop.f32.mrb[0].mxu0
    %v2019 = vadd.f32 %v1979, %v2018
    %v2020 = vpop.f32.mrb[0].mxu0
    %v2021 = vpop.f32.mrb[0].mxu0
    %v2022 = vpop.f32.mrb[0].mxu0
    %2023 = vdwg.mxu0
    %2024 = vst [vmem:[#allocation8] sm:$0xff] %v2019
    %v2025 = vlaneseq
    %v2026 = vand.u32 %v2025, 127
    %vm2027 = vcmp.lt.s32.totalorder %v2026, 10
    %v2028 = vsel %vm2027, %v2019, -inf
    %2029 = vmax.xlane.f32.xlu0 %v2028
    %v2030 = vpop.xlane.xlu0 %2029
    %v2031 = vsub.f32 %v2028, %v2030
    %v2032 = vmul.f32 %v2031, 1.442695
    %v2033 = vpow.pop %v2032
    %2034 = vadd.xlane.f32.xlu0 %v2033
    %v2035 = vpop.xlane.xlu0 %2034
    %v2036 = vlog2.pop %v2035
    %v2037 = vmul.f32 %v2036, 0.6931472
    %v2038 = vadd.f32 %v2037, %v2030
    %v2039 = vld [vmem:[%s5] sm:$0xff]
    %vm2040 = vcmp.ge.s32.totalorder %v2039, 0
    %vm2041 = vcmp.lt.s32.totalorder %v2039, 10
    %vm2042 = vmand %vm2040, %vm2041
    %2043 = vset.pattern.permute.xlu0 0
    %2044 = vperm.xlu0 %2043, %v2039
    %v2045 = vpop.permute.xlu0 %2044
    %vm2046 = vcmp.eq.s32.totalorder %v2026, %v2045
    %v2047 = vsel %vm2046, %v2019, 0.0
    %2048 = vadd.xlane.f32.xlu0 %v2047
    %v2049 = vpop.xlane.xlu0 %2048
    %v2050 = vsub.f32 %v2038, %v2049
    %v2051 = vsel %vm2042, %v2050, 0.0
    %2052 = vst.msk [vmem:[%s7] sm:$0xff] %vm92, %v2051
    // Predicated region
    $region38: #{tpu_custom_call.1} parent=1 // pred_check
      _
    $region39: #{tpu_custom_call.1} parent=1 // pred_check_branch
      %2054 = sbr.rel (0) target = $region41
    $region40: #{tpu_custom_call.1} parent=1 // pred_region
      %s2056 = ssub.s32 128, 128
      %2057 = vsyncadd [#allocation4], %s2056
      %s2059 = sshll.u32 [#allocation8], 4
      %s2060 = int_to_ptr.vmem [resolvable:$true] %s2059
      %2062 = dma.vmem_to_hbm [thread:$0]  %s2060, 128, %s6, [#allocation4]
    $region41: #{tpu_custom_call.1} parent=1 // pred_fallthru
      _
    // Predicated region
    $region42: #{tpu_custom_call.1} parent=1 // pred_check
      _
    $region43: #{tpu_custom_call.1} parent=1 // pred_check_branch
      %2064 = sbr.rel (0) target = $region45
    $region44: #{tpu_custom_call.1} parent=1 // pred_region
      _
    $region45: #{tpu_custom_call.1} parent=1 // pred_fallthru
      _
    // Predicated region
    $region46: #{tpu_custom_call.1} parent=1 // pred_check
      _
    $region47: #{tpu_custom_call.1} parent=1 // pred_check_branch
      %2066 = sbr.rel (0) target = $region49
    $region48: #{tpu_custom_call.1} parent=1 // pred_region
      %2067 = dma.done [#allocation4], 128
    $region49: #{tpu_custom_call.1} parent=1 // pred_fallthru
      _
    // Predicated region
    $region50: #{tpu_custom_call.1} parent=1 // pred_check
      _
    $region51: #{tpu_custom_call.1} parent=1 // pred_check_branch
      %2069 = sbr.rel (0) target = $region53
    $region52: #{tpu_custom_call.1} parent=1 // pred_region
      _
    $region53: #{tpu_custom_call.1} parent=1 // pred_fallthru
      _
    %2070 = vsyncpa [#allocation3], 1
    %2071 = vsyncpa [#allocation6], 1
    %2072 = vsyncpa [#allocation4], 1

</llo_original>
